<compile_context>
chip_gen: v7x
topology: tpu7x:2x2x1
jax: 0.10.0
libtpu: 0.0.40
codegen_flags: <defaults>
</compile_context>

<pallas_src>
import functools

import jax
import jax.numpy as jnp
from jax import lax
from jax.experimental import pallas as pl
from jax.experimental.pallas import tpu as pltpu


# ----------------------------------------------------------------------------
# In-kernel math helpers (traced inside the Pallas body)
# ----------------------------------------------------------------------------
def _gelu(x):
    # tanh-form GELU: the transcendental runs on the EUP slot instead of a
    # polynomial erf + divide on the VALU.  |err| vs exact erf GELU <= ~5e-4.
    c = 0.7978845608028654  # sqrt(2/pi)
    return 0.5 * x * (1.0 + jnp.tanh(c * (x + 0.044715 * (x * x * x))))


def _layernorm(x, gamma, beta, eps=1e-5):
    mu = jnp.mean(x, axis=-1, keepdims=True)
    var = jnp.mean((x - mu) ** 2, axis=-1, keepdims=True)
    return (x - mu) * lax.rsqrt(var + eps) * gamma + beta


# ----------------------------------------------------------------------------
# Fused kernel: conv stacks + pooling + cross-var gate + fusion + LayerNorms.
#   grid = (B,); x block = (1, C*N, D); output block = (1, C, D).
# ----------------------------------------------------------------------------
def triad_kernel(x_ref, dww_ref, dwb_ref, pww_ref, pwb_ref,
                 cw1_ref, cb1_ref, cw2_ref, cb2_ref,
                 fw1_ref, fb1_ref, fw2_ref, fb2_ref,
                 rw_ref, rb_ref, rlg_ref, rlb_ref, ng_ref, nb_ref,
                 out_ref, *, seq_len, num_vars):
    f32 = jnp.float32
    x = x_ref[0]                               # (C*N, D)
    cn, d = x.shape
    n, c = seq_len, num_vars

    # In-sequence position of every row (for the conv boundary masks).
    row = lax.broadcasted_iota(jnp.int32, (cn, d), 0)
    if n & (n - 1) == 0:                       # power-of-two seq length
        n_pos = row & (n - 1)
    else:
        n_pos = row % n

    def dwconv(inp, w, b, dil):
        # depthwise Conv1d(kernel=3, padding=dil, dilation=dil); BN pre-folded.
        # Shifts are sublane rotations (XLU slot); the masks implement the zero
        # padding and stop rows leaking across the stacked sequences.
        prev = pltpu.roll(inp, shift=dil, axis=0)        # prev[r] = inp[r-dil]
        prev = jnp.where(n_pos >= dil, prev, 0.0)
        nxt = pltpu.roll(inp, shift=cn - dil, axis=0)    # nxt[r]  = inp[r+dil]
        nxt = jnp.where(n_pos < n - dil, nxt, 0.0)
        return prev * w[0:1] + inp * w[1:2] + nxt * w[2:3] + b

    # ---- intra_patch: dwconv(+BN) -> GELU -> 1x1(+BN) -> (dropout) -> GELU
    h = _gelu(dwconv(x, dww_ref[0], dwb_ref[0], 1))
    intra_feat = _gelu(jnp.dot(h, pww_ref[0], preferred_element_type=f32)
                       + pwb_ref[0])                                    # (C*N, D)

    # ---- inter_patch: dilated dwconv(+BN) -> GELU -> 1x1(+BN) -> GELU
    g = _gelu(dwconv(intra_feat, dww_ref[1], dwb_ref[1], 2))
    g = _gelu(jnp.dot(g, pww_ref[1], preferred_element_type=f32) + pwb_ref[1])

    # ---- per-sequence means as a block-diagonal (C, C*N) pooling matmul (MXU)
    pr = lax.broadcasted_iota(jnp.int32, (c, cn), 0)
    pc = lax.broadcasted_iota(jnp.int32, (c, cn), 1)
    in_seq = (pc >= pr * n) & (pc < (pr + 1) * n)
    pool = jnp.where(in_seq, 1.0 / n, 0.0).astype(f32)
    intra_repr = jnp.dot(pool, intra_feat, preferred_element_type=f32)  # (C, D)
    var_feat = jnp.dot(pool, g, preferred_element_type=f32)             # (C, D)
    ori_agg = jnp.dot(pool, x, preferred_element_type=f32)              # (C, D)

    # ---- cross-variable gate
    global_avg = jnp.mean(var_feat, axis=0, keepdims=True)              # (1, D)
    hc = _gelu(jnp.dot(global_avg, cw1_ref[...], preferred_element_type=f32)
               + cb1_ref[...])                                          # (1, d_c)
    cv = jax.nn.sigmoid(jnp.dot(hc, cw2_ref[...], preferred_element_type=f32)
                        + cb2_ref[...])                                 # (1, C)
    # diag(cv) @ var_feat scales row i by cv[i] on the MXU (no lane<->sublane
    # transpose of the (1, C) gate row, no O(C^2) VPU reduce).
    rr = lax.broadcasted_iota(jnp.int32, (c, c), 0)
    cc = lax.broadcasted_iota(jnp.int32, (c, c), 1)
    diag_cv = jnp.where(rr == cc, jnp.broadcast_to(cv, (c, c)), 0.0)
    cross = jnp.dot(diag_cv, var_feat, preferred_element_type=f32)      # (C, D)

    # ---- fusion gate: Linear(3D->D) as three (D,D) blocks (== concat) -> GELU
    #      -> Linear(D->3) -> softmax
    fh = _gelu(jnp.dot(intra_repr, fw1_ref[0], preferred_element_type=f32)
               + jnp.dot(var_feat, fw1_ref[1], preferred_element_type=f32)
               + jnp.dot(cross, fw1_ref[2], preferred_element_type=f32)
               + fb1_ref[...])                                          # (C, D)
    logits = (jnp.dot(fh, fw2_ref[...], preferred_element_type=f32)
              + fb2_ref[...])                                           # (C, 3)
    logits = logits - jnp.max(logits, axis=-1, keepdims=True)
    e = jnp.exp(logits)
    gates = e * pl.reciprocal(jnp.sum(e, axis=-1, keepdims=True), approx=True)

    fused = (gates[:, 0:1] * intra_repr + gates[:, 1:2] * var_feat
             + gates[:, 2:3] * cross)                                   # (C, D)

    # ---- residual adapter + final LayerNorm (dropout == identity in eval)
    res = jnp.dot(ori_agg, rw_ref[...], preferred_element_type=f32) + rb_ref[...]
    res = _layernorm(res, rlg_ref[...], rlb_ref[...])
    out_ref[0] = _layernorm(fused + res, ng_ref[...], nb_ref[...])

    # NOTE: for very long sequences (N >= ~512 at D=256+) the conv stage should
    # be tiled over N inside the kernel with a dilation-2 halo to bound the
    # VMEM live set on v7x (64 MiB); unnecessary at these shapes.


# ----------------------------------------------------------------------------
# Host-side helpers
# ----------------------------------------------------------------------------
def _const_spec(arr):
    zeros = (0,) * arr.ndim
    return pl.BlockSpec(arr.shape, lambda b, _z=zeros: _z)


def _fold_bn(p):
    """Fold eval-mode BatchNorm1d into the adjacent conv weights/biases."""
    eps = 1e-5
    s = p["bn_g"] * lax.rsqrt(p["bn_v"] + eps)                      # (4, D)
    t = p["bn_b"] - p["bn_m"] * s                                   # (4, D)
    dw_w = jnp.stack([p["dw_w"][0] * s[0][None, :],
                      p["dw_w"][1] * s[2][None, :]])                # (2, 3, D)
    dw_b = jnp.stack([(p["conv_b"][0] * s[0] + t[0])[None, :],
                      (p["conv_b"][2] * s[2] + t[2])[None, :]])     # (2, 1, D)
    pw_w = jnp.stack([p["pw_w"][0] * s[1][None, :],
                      p["pw_w"][1] * s[3][None, :]])                # (2, D, D)
    pw_b = jnp.stack([(p["conv_b"][1] * s[1] + t[1])[None, :],
                      (p["conv_b"][3] * s[3] + t[3])[None, :]])     # (2, 1, D)
    return dw_w, dw_b, pw_w, pw_b


@jax.jit
def triad_forward(x, params):
    B, C, N, D = x.shape
    CN = C * N
    x_seq = x.reshape(B, CN, D)        # channels-last slab per batch element

    dw_w, dw_b, pw_w, pw_b = _fold_bn(params)
    weights = [dw_w, dw_b, pw_w, pw_b,
               params["cw1"], params["cb1"], params["cw2"], params["cb2"],
               params["fw1"], params["fb1"], params["fw2"], params["fb2"],
               params["rw"], params["rb"], params["rlg"], params["rlb"],
               params["ng"], params["nb"]]

    kernel = functools.partial(triad_kernel, seq_len=N, num_vars=C)

    in_specs = [pl.BlockSpec((1, CN, D), lambda b: (b, 0, 0))]
    in_specs += [_const_spec(w) for w in weights]

    return pl.pallas_call(
        kernel,
        out_shape=jax.ShapeDtypeStruct((B, C, D), jnp.float32),
        grid_spec=pltpu.PrefetchScalarGridSpec(
            num_scalar_prefetch=0,
            grid=(B,),
            in_specs=in_specs,
            out_specs=pl.BlockSpec((1, C, D), lambda b: (b, 0, 0)),
        ),
        compiler_params=pltpu.CompilerParams(
            # independent steps -> megacore / v7x dual TC can split the batch
            dimension_semantics=("parallel",),
            vmem_limit_bytes=32 * 1024 * 1024,
        ),
    )(x_seq, *weights)


# ----------------------------------------------------------------------------
# Deterministic parameter init (synthetic; shapes follow the module __init__)
# ----------------------------------------------------------------------------
def init_params(key, num_features, embed_dim, d_c):
    C, D = num_features, embed_dim
    ks = jax.random.split(key, 24)
    nrm = lambda k, s, sc=0.1: (sc * jax.random.normal(k, s)).astype(jnp.float32)
    p = {
        # conv stage (intra_patch + inter_patch), stacked:
        "dw_w":   nrm(ks[0], (2, 3, D)),          # depthwise taps: [intra, inter]
        "conv_b": nrm(ks[1], (4, D), 0.05),       # [dw1, pw1, dw2, pw2] biases
        "bn_g":   1.0 + nrm(ks[2], (4, D), 0.05),
        "bn_b":   nrm(ks[3], (4, D), 0.05),
        "bn_m":   nrm(ks[4], (4, D), 0.05),       # running_mean (eval mode)
        "bn_v":   1.0 + 0.1 * jax.random.uniform(ks[5], (4, D), jnp.float32),
        "pw_w":   nrm(ks[6], (2, D, D)),          # 1x1 convs, stored (D_in, D_out)
        # cross_var MLP
        "cw1":    nrm(ks[7], (D, d_c)),
        "cb1":    nrm(ks[8], (1, d_c), 0.05),
        "cw2":    nrm(ks[9], (d_c, C)),
        "cb2":    nrm(ks[10], (1, C), 0.05),
        # fusion gate (Linear(3D,D) split into 3 x (D,D) blocks)
        "fw1":    nrm(ks[11], (3, D, D)),
        "fb1":    nrm(ks[12], (1, D), 0.05),
        "fw2":    nrm(ks[13], (D, 3)),
        "fb2":    nrm(ks[14], (1, 3), 0.05),
        # res_adapter (Linear + LayerNorm)
        "rw":     nrm(ks[15], (D, D)),
        "rb":     nrm(ks[16], (1, D), 0.05),
        "rlg":    1.0 + nrm(ks[17], (1, D), 0.05),
        "rlb":    nrm(ks[18], (1, D), 0.05),
        # final LayerNorm
        "ng":     1.0 + nrm(ks[19], (1, D), 0.05),
        "nb":     nrm(ks[20], (1, D), 0.05),
    }
    return p


# ----------------------------------------------------------------------------
# Pure-JAX reference (eval mode, exact erf GELU), for a correctness cross-check
# ----------------------------------------------------------------------------
def reference_forward(x, p):
    HI = lax.Precision.HIGHEST
    B, C, N, D = x.shape
    gelu = lambda t: jax.nn.gelu(t, approximate=False)

    xs = jnp.transpose(x.reshape(B * C, N, D), (0, 2, 1))   # (BC, D, N)

    def dwconv(inp, w, b, dil):
        wt = jnp.transpose(w)[:, None, :]                    # (D, 1, 3)
        y = lax.conv_general_dilated(
            inp, wt, window_strides=(1,), padding=[(dil, dil)],
            rhs_dilation=(dil,), dimension_numbers=("NCH", "OIH", "NCH"),
            feature_group_count=D, precision=HI)
        return y + b[None, :, None]

    def bn(y, j):
        return ((y - p["bn_m"][j][None, :, None])
                / jnp.sqrt(p["bn_v"][j][None, :, None] + 1e-5)
                * p["bn_g"][j][None, :, None] + p["bn_b"][j][None, :, None])

    def pw(y, j, bidx):
        return (jnp.einsum("bdn,de->ben", y, p["pw_w"][j], precision=HI)
                + p["conv_b"][bidx][None, :, None])

    h = gelu(bn(dwconv(xs, p["dw_w"][0], p["conv_b"][0], 1), 0))
    intra_feat = gelu(bn(pw(h, 0, 1), 1))

    g = gelu(bn(dwconv(intra_feat, p["dw_w"][1], p["conv_b"][2], 2), 2))
    g = gelu(bn(pw(g, 1, 3), 3))
    var_feat = jnp.mean(g, axis=-1).reshape(B, C, D)

    global_avg = jnp.mean(var_feat, axis=1, keepdims=True)
    hc = gelu(jnp.einsum("bod,de->boe", global_avg, p["cw1"], precision=HI) + p["cb1"])
    cv = jax.nn.sigmoid(jnp.einsum("boe,ec->boc", hc, p["cw2"], precision=HI) + p["cb2"])
    cross = var_feat * jnp.transpose(cv, (0, 2, 1))

    intra_repr = jnp.mean(intra_feat, axis=-1).reshape(B, C, D)
    fw1 = jnp.concatenate([p["fw1"][0], p["fw1"][1], p["fw1"][2]], axis=0)
    fin = jnp.concatenate([intra_repr, var_feat, cross], axis=-1)
    fh = gelu(jnp.einsum("bcf,fd->bcd", fin, fw1, precision=HI) + p["fb1"])
    gates = jax.nn.softmax(
        jnp.einsum("bcd,dk->bck", fh, p["fw2"], precision=HI) + p["fb2"], axis=-1)
    fused = (gates[..., 0:1] * intra_repr + gates[..., 1:2] * var_feat
             + gates[..., 2:3] * cross)

    def ln(y, gm, bt):
        m = jnp.mean(y, axis=-1, keepdims=True)
        v = jnp.mean((y - m) ** 2, axis=-1, keepdims=True)
        return (y - m) / jnp.sqrt(v + 1e-5) * gm + bt

    ori_agg = jnp.mean(x, axis=2)
    res = ln(jnp.einsum("bcd,de->bce", ori_agg, p["rw"], precision=HI) + p["rb"],
             p["rlg"], p["rlb"])
    return ln(fused + res, p["ng"], p["nb"])


# ----------------------------------------------------------------------------
if __name__ == "__main__":
    B, C, N, D, d_c = 2, 4, 8, 32, 16   # batch, num_features, patches, embed_dim, d_c

    key = jax.random.PRNGKey(0)
    kx, kp = jax.random.split(key)
    x = jax.random.normal(kx, (B, C, N, D), dtype=jnp.float32)
    params = init_params(kp, num_features=C, embed_dim=D, d_c=d_c)

    out = jax.block_until_ready(triad_forward(x, params))
    ref = jax.block_until_ready(reference_forward(x, params))

    assert out.shape == (B, C, D)
    assert jnp.all(jnp.isfinite(out)), "non-finite output"
    max_err = float(jnp.max(jnp.abs(out - ref)))
    assert max_err < 5e-3, f"mismatch vs reference: {max_err}"

    print("KERNEL_OK")
</pallas_src>

<mosaic_0001>
module attributes {stable_mosaic.version = 11 : i64} {
  func.func @triad_kernel(%arg0: i32, %arg1: memref<1x32x32xf32, #tpu.memory_space<vmem>>, %arg2: memref<2x3x32xf32, #tpu.memory_space<vmem>>, %arg3: memref<2x1x32xf32, #tpu.memory_space<vmem>>, %arg4: memref<2x32x32xf32, #tpu.memory_space<vmem>>, %arg5: memref<2x1x32xf32, #tpu.memory_space<vmem>>, %arg6: memref<32x16xf32, #tpu.memory_space<vmem>>, %arg7: memref<1x16xf32, #tpu.memory_space<vmem>>, %arg8: memref<16x4xf32, #tpu.memory_space<vmem>>, %arg9: memref<1x4xf32, #tpu.memory_space<vmem>>, %arg10: memref<3x32x32xf32, #tpu.memory_space<vmem>>, %arg11: memref<1x32xf32, #tpu.memory_space<vmem>>, %arg12: memref<32x3xf32, #tpu.memory_space<vmem>>, %arg13: memref<1x3xf32, #tpu.memory_space<vmem>>, %arg14: memref<32x32xf32, #tpu.memory_space<vmem>>, %arg15: memref<1x32xf32, #tpu.memory_space<vmem>>, %arg16: memref<1x32xf32, #tpu.memory_space<vmem>>, %arg17: memref<1x32xf32, #tpu.memory_space<vmem>>, %arg18: memref<1x32xf32, #tpu.memory_space<vmem>>, %arg19: memref<1x32xf32, #tpu.memory_space<vmem>>, %arg20: memref<1x4x32xf32, #tpu.memory_space<vmem>>) attributes {dimension_semantics = [#tpu.dimension_semantics<parallel>], iteration_bounds = array<i64: 2>, scalar_prefetch = 0 : i64, scratch_operands = 0 : i64, tpu.core_type = #tpu.core_type<tc>, window_params = [{transform_indices = @transform_0, window_bounds = array<i64: 1, 32, 32>}, {pipeline_mode = #tpu.pipeline_mode<synchronous>, transform_indices = @transform_1, window_bounds = array<i64: 2, 3, 32>}, {pipeline_mode = #tpu.pipeline_mode<synchronous>, transform_indices = @transform_2, window_bounds = array<i64: 2, 1, 32>}, {pipeline_mode = #tpu.pipeline_mode<synchronous>, transform_indices = @transform_3, window_bounds = array<i64: 2, 32, 32>}, {pipeline_mode = #tpu.pipeline_mode<synchronous>, transform_indices = @transform_4, window_bounds = array<i64: 2, 1, 32>}, {pipeline_mode = #tpu.pipeline_mode<synchronous>, transform_indices = @transform_5, window_bounds = array<i64: 32, 16>}, {pipeline_mode = #tpu.pipeline_mode<synchronous>, transform_indices = @transform_6, window_bounds = array<i64: 1, 16>}, {pipeline_mode = #tpu.pipeline_mode<synchronous>, transform_indices = @transform_7, window_bounds = array<i64: 16, 4>}, {pipeline_mode = #tpu.pipeline_mode<synchronous>, transform_indices = @transform_8, window_bounds = array<i64: 1, 4>}, {pipeline_mode = #tpu.pipeline_mode<synchronous>, transform_indices = @transform_9, window_bounds = array<i64: 3, 32, 32>}, {pipeline_mode = #tpu.pipeline_mode<synchronous>, transform_indices = @transform_10, window_bounds = array<i64: 1, 32>}, {pipeline_mode = #tpu.pipeline_mode<synchronous>, transform_indices = @transform_11, window_bounds = array<i64: 32, 3>}, {pipeline_mode = #tpu.pipeline_mode<synchronous>, transform_indices = @transform_12, window_bounds = array<i64: 1, 3>}, {pipeline_mode = #tpu.pipeline_mode<synchronous>, transform_indices = @transform_13, window_bounds = array<i64: 32, 32>}, {pipeline_mode = #tpu.pipeline_mode<synchronous>, transform_indices = @transform_14, window_bounds = array<i64: 1, 32>}, {pipeline_mode = #tpu.pipeline_mode<synchronous>, transform_indices = @transform_15, window_bounds = array<i64: 1, 32>}, {pipeline_mode = #tpu.pipeline_mode<synchronous>, transform_indices = @transform_16, window_bounds = array<i64: 1, 32>}, {pipeline_mode = #tpu.pipeline_mode<synchronous>, transform_indices = @transform_17, window_bounds = array<i64: 1, 32>}, {pipeline_mode = #tpu.pipeline_mode<synchronous>, transform_indices = @transform_18, window_bounds = array<i64: 1, 32>}, {transform_indices = @transform_19, window_bounds = array<i64: 1, 4, 32>}]} {
    %c0 = arith.constant 0 : index
    %c0_0 = arith.constant 0 : index
    %c0_1 = arith.constant 0 : index
    %0 = vector.load %arg1[%c0, %c0_0, %c0_1] : memref<1x32x32xf32, #tpu.memory_space<vmem>>, vector<1x32x32xf32>
    %1 = vector.shape_cast %0 : vector<1x32x32xf32> to vector<32x32xf32>
    %2 = tpu.iota {dimensions = array<i32: 0>} : vector<32x32xi32>
    %c7_i32 = arith.constant 7 : i32
    %3 = vector.broadcast %c7_i32 : i32 to vector<32x32xi32>
    %4 = arith.andi %2, %3 : vector<32x32xi32>
    %c0_2 = arith.constant 0 : index
    %c0_3 = arith.constant 0 : index
    %c0_4 = arith.constant 0 : index
    %5 = vector.load %arg2[%c0_2, %c0_3, %c0_4] : memref<2x3x32xf32, #tpu.memory_space<vmem>>, vector<1x3x32xf32>
    %6 = vector.shape_cast %5 : vector<1x3x32xf32> to vector<3x32xf32>
    %c0_5 = arith.constant 0 : index
    %c0_6 = arith.constant 0 : index
    %c0_7 = arith.constant 0 : index
    %7 = vector.load %arg3[%c0_5, %c0_6, %c0_7] : memref<2x1x32xf32, #tpu.memory_space<vmem>>, vector<1x1x32xf32>
    %8 = vector.shape_cast %7 : vector<1x1x32xf32> to vector<1x32xf32>
    %c1_i32 = arith.constant 1 : i32
    %9 = tpu.dynamic_rotate %1 by %c1_i32 dim 0 : vector<32x32xf32>, i32 -> vector<32x32xf32>
    %c1_i32_8 = arith.constant 1 : i32
    %10 = vector.broadcast %c1_i32_8 : i32 to vector<32x32xi32>
    %11 = arith.cmpi sge, %4, %10 : vector<32x32xi32>
    %cst = arith.constant 0.000000e+00 : f32
    %12 = vector.broadcast %cst : f32 to vector<32x32xf32>
    %13 = arith.select %11, %9, %12 : vector<32x32xi1>, vector<32x32xf32>
    %c31_i32 = arith.constant 31 : i32
    %14 = tpu.dynamic_rotate %1 by %c31_i32 dim 0 : vector<32x32xf32>, i32 -> vector<32x32xf32>
    %c7_i32_9 = arith.constant 7 : i32
    %15 = vector.broadcast %c7_i32_9 : i32 to vector<32x32xi32>
    %16 = arith.cmpi slt, %4, %15 : vector<32x32xi32>
    %cst_10 = arith.constant 0.000000e+00 : f32
    %17 = vector.broadcast %cst_10 : f32 to vector<32x32xf32>
    %18 = arith.select %16, %14, %17 : vector<32x32xi1>, vector<32x32xf32>
    %19 = vector.extract_strided_slice %6 {offsets = [0, 0], sizes = [1, 32], strides = [1, 1]} : vector<3x32xf32> to vector<1x32xf32>
    %20 = vector.broadcast %19 : vector<1x32xf32> to vector<32x32xf32>
    %21 = arith.mulf %13, %20 : vector<32x32xf32>
    %22 = vector.extract_strided_slice %6 {offsets = [1, 0], sizes = [1, 32], strides = [1, 1]} : vector<3x32xf32> to vector<1x32xf32>
    %23 = vector.broadcast %22 : vector<1x32xf32> to vector<32x32xf32>
    %24 = arith.mulf %1, %23 : vector<32x32xf32>
    %25 = arith.addf %21, %24 : vector<32x32xf32>
    %26 = vector.extract_strided_slice %6 {offsets = [2, 0], sizes = [1, 32], strides = [1, 1]} : vector<3x32xf32> to vector<1x32xf32>
    %27 = vector.broadcast %26 : vector<1x32xf32> to vector<32x32xf32>
    %28 = arith.mulf %18, %27 : vector<32x32xf32>
    %29 = arith.addf %25, %28 : vector<32x32xf32>
    %30 = vector.broadcast %8 : vector<1x32xf32> to vector<32x32xf32>
    %31 = arith.addf %29, %30 : vector<32x32xf32>
    %cst_11 = arith.constant 5.000000e-01 : f32
    %32 = vector.broadcast %cst_11 : f32 to vector<32x32xf32>
    %33 = arith.mulf %32, %31 : vector<32x32xf32>
    %34 = arith.mulf %31, %31 : vector<32x32xf32>
    %35 = arith.mulf %34, %31 : vector<32x32xf32>
    %cst_12 = arith.constant 4.471500e-02 : f32
    %36 = vector.broadcast %cst_12 : f32 to vector<32x32xf32>
    %37 = arith.mulf %36, %35 : vector<32x32xf32>
    %38 = arith.addf %31, %37 : vector<32x32xf32>
    %cst_13 = arith.constant 0.797884583 : f32
    %39 = vector.broadcast %cst_13 : f32 to vector<32x32xf32>
    %40 = arith.mulf %39, %38 : vector<32x32xf32>
    %41 = math.tanh %40 : vector<32x32xf32>
    %cst_14 = arith.constant 1.000000e+00 : f32
    %42 = vector.broadcast %cst_14 : f32 to vector<32x32xf32>
    %43 = arith.addf %42, %41 : vector<32x32xf32>
    %44 = arith.mulf %33, %43 : vector<32x32xf32>
    %c0_15 = arith.constant 0 : index
    %c0_16 = arith.constant 0 : index
    %c0_17 = arith.constant 0 : index
    %45 = vector.load %arg4[%c0_15, %c0_16, %c0_17] : memref<2x32x32xf32, #tpu.memory_space<vmem>>, vector<1x32x32xf32>
    %46 = vector.shape_cast %45 : vector<1x32x32xf32> to vector<32x32xf32>
    %cst_18 = arith.constant dense<0.000000e+00> : vector<32x32xf32>
    %47 = tpu.matmul %44, %46, %cst_18 {dimension_numbers = #tpu.dot_dimension_numbers<[1], [0], [0], [1], [0, 0, 1, 1], [], []>} : vector<32x32xf32>, vector<32x32xf32>, vector<32x32xf32> -> vector<32x32xf32>
    %c0_19 = arith.constant 0 : index
    %c0_20 = arith.constant 0 : index
    %c0_21 = arith.constant 0 : index
    %48 = vector.load %arg5[%c0_19, %c0_20, %c0_21] : memref<2x1x32xf32, #tpu.memory_space<vmem>>, vector<1x1x32xf32>
    %49 = vector.shape_cast %48 : vector<1x1x32xf32> to vector<1x32xf32>
    %50 = vector.broadcast %49 : vector<1x32xf32> to vector<32x32xf32>
    %51 = arith.addf %47, %50 : vector<32x32xf32>
    %cst_22 = arith.constant 5.000000e-01 : f32
    %52 = vector.broadcast %cst_22 : f32 to vector<32x32xf32>
    %53 = arith.mulf %52, %51 : vector<32x32xf32>
    %54 = arith.mulf %51, %51 : vector<32x32xf32>
    %55 = arith.mulf %54, %51 : vector<32x32xf32>
    %cst_23 = arith.constant 4.471500e-02 : f32
    %56 = vector.broadcast %cst_23 : f32 to vector<32x32xf32>
    %57 = arith.mulf %56, %55 : vector<32x32xf32>
    %58 = arith.addf %51, %57 : vector<32x32xf32>
    %cst_24 = arith.constant 0.797884583 : f32
    %59 = vector.broadcast %cst_24 : f32 to vector<32x32xf32>
    %60 = arith.mulf %59, %58 : vector<32x32xf32>
    %61 = math.tanh %60 : vector<32x32xf32>
    %cst_25 = arith.constant 1.000000e+00 : f32
    %62 = vector.broadcast %cst_25 : f32 to vector<32x32xf32>
    %63 = arith.addf %62, %61 : vector<32x32xf32>
    %64 = arith.mulf %53, %63 : vector<32x32xf32>
    %c1 = arith.constant 1 : index
    %c0_26 = arith.constant 0 : index
    %c0_27 = arith.constant 0 : index
    %65 = vector.load %arg2[%c1, %c0_26, %c0_27] : memref<2x3x32xf32, #tpu.memory_space<vmem>>, vector<1x3x32xf32>
    %66 = vector.shape_cast %65 : vector<1x3x32xf32> to vector<3x32xf32>
    %c1_28 = arith.constant 1 : index
    %c0_29 = arith.constant 0 : index
    %c0_30 = arith.constant 0 : index
    %67 = vector.load %arg3[%c1_28, %c0_29, %c0_30] : memref<2x1x32xf32, #tpu.memory_space<vmem>>, vector<1x1x32xf32>
    %68 = vector.shape_cast %67 : vector<1x1x32xf32> to vector<1x32xf32>
    %c2_i32 = arith.constant 2 : i32
    %69 = tpu.dynamic_rotate %64 by %c2_i32 dim 0 : vector<32x32xf32>, i32 -> vector<32x32xf32>
    %c2_i32_31 = arith.constant 2 : i32
    %70 = vector.broadcast %c2_i32_31 : i32 to vector<32x32xi32>
    %71 = arith.cmpi sge, %4, %70 : vector<32x32xi32>
    %cst_32 = arith.constant 0.000000e+00 : f32
    %72 = vector.broadcast %cst_32 : f32 to vector<32x32xf32>
    %73 = arith.select %71, %69, %72 : vector<32x32xi1>, vector<32x32xf32>
    %c30_i32 = arith.constant 30 : i32
    %74 = tpu.dynamic_rotate %64 by %c30_i32 dim 0 : vector<32x32xf32>, i32 -> vector<32x32xf32>
    %c6_i32 = arith.constant 6 : i32
    %75 = vector.broadcast %c6_i32 : i32 to vector<32x32xi32>
    %76 = arith.cmpi slt, %4, %75 : vector<32x32xi32>
    %cst_33 = arith.constant 0.000000e+00 : f32
    %77 = vector.broadcast %cst_33 : f32 to vector<32x32xf32>
    %78 = arith.select %76, %74, %77 : vector<32x32xi1>, vector<32x32xf32>
    %79 = vector.extract_strided_slice %66 {offsets = [0, 0], sizes = [1, 32], strides = [1, 1]} : vector<3x32xf32> to vector<1x32xf32>
    %80 = vector.broadcast %79 : vector<1x32xf32> to vector<32x32xf32>
    %81 = arith.mulf %73, %80 : vector<32x32xf32>
    %82 = vector.extract_strided_slice %66 {offsets = [1, 0], sizes = [1, 32], strides = [1, 1]} : vector<3x32xf32> to vector<1x32xf32>
    %83 = vector.broadcast %82 : vector<1x32xf32> to vector<32x32xf32>
    %84 = arith.mulf %64, %83 : vector<32x32xf32>
    %85 = arith.addf %81, %84 : vector<32x32xf32>
    %86 = vector.extract_strided_slice %66 {offsets = [2, 0], sizes = [1, 32], strides = [1, 1]} : vector<3x32xf32> to vector<1x32xf32>
    %87 = vector.broadcast %86 : vector<1x32xf32> to vector<32x32xf32>
    %88 = arith.mulf %78, %87 : vector<32x32xf32>
    %89 = arith.addf %85, %88 : vector<32x32xf32>
    %90 = vector.broadcast %68 : vector<1x32xf32> to vector<32x32xf32>
    %91 = arith.addf %89, %90 : vector<32x32xf32>
    %cst_34 = arith.constant 5.000000e-01 : f32
    %92 = vector.broadcast %cst_34 : f32 to vector<32x32xf32>
    %93 = arith.mulf %92, %91 : vector<32x32xf32>
    %94 = arith.mulf %91, %91 : vector<32x32xf32>
    %95 = arith.mulf %94, %91 : vector<32x32xf32>
    %cst_35 = arith.constant 4.471500e-02 : f32
    %96 = vector.broadcast %cst_35 : f32 to vector<32x32xf32>
    %97 = arith.mulf %96, %95 : vector<32x32xf32>
    %98 = arith.addf %91, %97 : vector<32x32xf32>
    %cst_36 = arith.constant 0.797884583 : f32
    %99 = vector.broadcast %cst_36 : f32 to vector<32x32xf32>
    %100 = arith.mulf %99, %98 : vector<32x32xf32>
    %101 = math.tanh %100 : vector<32x32xf32>
    %cst_37 = arith.constant 1.000000e+00 : f32
    %102 = vector.broadcast %cst_37 : f32 to vector<32x32xf32>
    %103 = arith.addf %102, %101 : vector<32x32xf32>
    %104 = arith.mulf %93, %103 : vector<32x32xf32>
    %c1_38 = arith.constant 1 : index
    %c0_39 = arith.constant 0 : index
    %c0_40 = arith.constant 0 : index
    %105 = vector.load %arg4[%c1_38, %c0_39, %c0_40] : memref<2x32x32xf32, #tpu.memory_space<vmem>>, vector<1x32x32xf32>
    %106 = vector.shape_cast %105 : vector<1x32x32xf32> to vector<32x32xf32>
    %cst_41 = arith.constant dense<0.000000e+00> : vector<32x32xf32>
    %107 = tpu.matmul %104, %106, %cst_41 {dimension_numbers = #tpu.dot_dimension_numbers<[1], [0], [0], [1], [0, 0, 1, 1], [], []>} : vector<32x32xf32>, vector<32x32xf32>, vector<32x32xf32> -> vector<32x32xf32>
    %c1_42 = arith.constant 1 : index
    %c0_43 = arith.constant 0 : index
    %c0_44 = arith.constant 0 : index
    %108 = vector.load %arg5[%c1_42, %c0_43, %c0_44] : memref<2x1x32xf32, #tpu.memory_space<vmem>>, vector<1x1x32xf32>
    %109 = vector.shape_cast %108 : vector<1x1x32xf32> to vector<1x32xf32>
    %110 = vector.broadcast %109 : vector<1x32xf32> to vector<32x32xf32>
    %111 = arith.addf %107, %110 : vector<32x32xf32>
    %cst_45 = arith.constant 5.000000e-01 : f32
    %112 = vector.broadcast %cst_45 : f32 to vector<32x32xf32>
    %113 = arith.mulf %112, %111 : vector<32x32xf32>
    %114 = arith.mulf %111, %111 : vector<32x32xf32>
    %115 = arith.mulf %114, %111 : vector<32x32xf32>
    %cst_46 = arith.constant 4.471500e-02 : f32
    %116 = vector.broadcast %cst_46 : f32 to vector<32x32xf32>
    %117 = arith.mulf %116, %115 : vector<32x32xf32>
    %118 = arith.addf %111, %117 : vector<32x32xf32>
    %cst_47 = arith.constant 0.797884583 : f32
    %119 = vector.broadcast %cst_47 : f32 to vector<32x32xf32>
    %120 = arith.mulf %119, %118 : vector<32x32xf32>
    %121 = math.tanh %120 : vector<32x32xf32>
    %cst_48 = arith.constant 1.000000e+00 : f32
    %122 = vector.broadcast %cst_48 : f32 to vector<32x32xf32>
    %123 = arith.addf %122, %121 : vector<32x32xf32>
    %124 = arith.mulf %113, %123 : vector<32x32xf32>
    %125 = tpu.iota {dimensions = array<i32: 0>} : vector<4x32xi32>
    %126 = tpu.iota {dimensions = array<i32: 1>} : vector<4x32xi32>
    %c8_i32 = arith.constant 8 : i32
    %127 = vector.broadcast %c8_i32 : i32 to vector<4x32xi32>
    %128 = arith.muli %125, %127 : vector<4x32xi32>
    %129 = arith.cmpi sge, %126, %128 : vector<4x32xi32>
    %c1_i32_49 = arith.constant 1 : i32
    %130 = vector.broadcast %c1_i32_49 : i32 to vector<4x32xi32>
    %131 = arith.addi %125, %130 : vector<4x32xi32>
    %c8_i32_50 = arith.constant 8 : i32
    %132 = vector.broadcast %c8_i32_50 : i32 to vector<4x32xi32>
    %133 = arith.muli %131, %132 : vector<4x32xi32>
    %134 = arith.cmpi slt, %126, %133 : vector<4x32xi32>
    %135 = arith.andi %129, %134 : vector<4x32xi1>
    %cst_51 = arith.constant 1.250000e-01 : f32
    %cst_52 = arith.constant 0.000000e+00 : f32
    %136 = vector.broadcast %cst_51 : f32 to vector<4x32xf32>
    %137 = vector.broadcast %cst_52 : f32 to vector<4x32xf32>
    %138 = arith.select %135, %136, %137 : vector<4x32xi1>, vector<4x32xf32>
    %cst_53 = arith.constant dense<0.000000e+00> : vector<4x32xf32>
    %139 = tpu.matmul %138, %64, %cst_53 {dimension_numbers = #tpu.dot_dimension_numbers<[1], [0], [0], [1], [0, 0, 1, 1], [], []>} : vector<4x32xf32>, vector<32x32xf32>, vector<4x32xf32> -> vector<4x32xf32>
    %cst_54 = arith.constant dense<0.000000e+00> : vector<4x32xf32>
    %140 = tpu.matmul %138, %124, %cst_54 {dimension_numbers = #tpu.dot_dimension_numbers<[1], [0], [0], [1], [0, 0, 1, 1], [], []>} : vector<4x32xf32>, vector<32x32xf32>, vector<4x32xf32> -> vector<4x32xf32>
    %cst_55 = arith.constant dense<0.000000e+00> : vector<4x32xf32>
    %141 = tpu.matmul %138, %1, %cst_55 {dimension_numbers = #tpu.dot_dimension_numbers<[1], [0], [0], [1], [0, 0, 1, 1], [], []>} : vector<4x32xf32>, vector<32x32xf32>, vector<4x32xf32> -> vector<4x32xf32>
    %cst_56 = arith.constant dense<0.000000e+00> : vector<32xf32>
    %142 = vector.multi_reduction <add>, %140, %cst_56 [0] : vector<4x32xf32> to vector<32xf32>
    %143 = vector.shape_cast %142 : vector<32xf32> to vector<1x32xf32>
    %cst_57 = arith.constant 4.000000e+00 : f32
    %144 = vector.broadcast %cst_57 : f32 to vector<1x32xf32>
    %145 = arith.divf %143, %144 : vector<1x32xf32>
    %c0_58 = arith.constant 0 : index
    %c0_59 = arith.constant 0 : index
    %146 = vector.load %arg6[%c0_58, %c0_59] : memref<32x16xf32, #tpu.memory_space<vmem>>, vector<32x16xf32>
    %cst_60 = arith.constant dense<0.000000e+00> : vector<1x16xf32>
    %147 = tpu.matmul %145, %146, %cst_60 {dimension_numbers = #tpu.dot_dimension_numbers<[1], [0], [0], [1], [0, 0, 1, 1], [], []>} : vector<1x32xf32>, vector<32x16xf32>, vector<1x16xf32> -> vector<1x16xf32>
    %c0_61 = arith.constant 0 : index
    %c0_62 = arith.constant 0 : index
    %148 = vector.load %arg7[%c0_61, %c0_62] : memref<1x16xf32, #tpu.memory_space<vmem>>, vector<1x16xf32>
    %149 = arith.addf %147, %148 : vector<1x16xf32>
    %cst_63 = arith.constant 5.000000e-01 : f32
    %150 = vector.broadcast %cst_63 : f32 to vector<1x16xf32>
    %151 = arith.mulf %150, %149 : vector<1x16xf32>
    %152 = arith.mulf %149, %149 : vector<1x16xf32>
    %153 = arith.mulf %152, %149 : vector<1x16xf32>
    %cst_64 = arith.constant 4.471500e-02 : f32
    %154 = vector.broadcast %cst_64 : f32 to vector<1x16xf32>
    %155 = arith.mulf %154, %153 : vector<1x16xf32>
    %156 = arith.addf %149, %155 : vector<1x16xf32>
    %cst_65 = arith.constant 0.797884583 : f32
    %157 = vector.broadcast %cst_65 : f32 to vector<1x16xf32>
    %158 = arith.mulf %157, %156 : vector<1x16xf32>
    %159 = math.tanh %158 : vector<1x16xf32>
    %cst_66 = arith.constant 1.000000e+00 : f32
    %160 = vector.broadcast %cst_66 : f32 to vector<1x16xf32>
    %161 = arith.addf %160, %159 : vector<1x16xf32>
    %162 = arith.mulf %151, %161 : vector<1x16xf32>
    %c0_67 = arith.constant 0 : index
    %c0_68 = arith.constant 0 : index
    %163 = vector.load %arg8[%c0_67, %c0_68] : memref<16x4xf32, #tpu.memory_space<vmem>>, vector<16x4xf32>
    %cst_69 = arith.constant dense<0.000000e+00> : vector<1x4xf32>
    %164 = tpu.matmul %162, %163, %cst_69 {dimension_numbers = #tpu.dot_dimension_numbers<[1], [0], [0], [1], [0, 0, 1, 1], [], []>} : vector<1x16xf32>, vector<16x4xf32>, vector<1x4xf32> -> vector<1x4xf32>
    %c0_70 = arith.constant 0 : index
    %c0_71 = arith.constant 0 : index
    %165 = vector.load %arg9[%c0_70, %c0_71] : memref<1x4xf32, #tpu.memory_space<vmem>>, vector<1x4xf32>
    %166 = arith.addf %164, %165 : vector<1x4xf32>
    %167 = arith.negf %166 : vector<1x4xf32>
    %168 = math.exp %167 : vector<1x4xf32>
    %cst_72 = arith.constant 1.000000e+00 : f32
    %169 = vector.broadcast %cst_72 : f32 to vector<1x4xf32>
    %170 = arith.addf %169, %168 : vector<1x4xf32>
    %171 = arith.divf %169, %170 : vector<1x4xf32>
    %172 = tpu.iota {dimensions = array<i32: 0>} : vector<4x4xi32>
    %173 = tpu.iota {dimensions = array<i32: 1>} : vector<4x4xi32>
    %174 = arith.cmpi eq, %172, %173 : vector<4x4xi32>
    %175 = vector.shape_cast %171 : vector<1x4xf32> to vector<1x4xf32>
    %176 = vector.broadcast %175 : vector<1x4xf32> to vector<4x4xf32>
    %cst_73 = arith.constant 0.000000e+00 : f32
    %177 = vector.broadcast %cst_73 : f32 to vector<4x4xf32>
    %178 = arith.select %174, %176, %177 : vector<4x4xi1>, vector<4x4xf32>
    %cst_74 = arith.constant dense<0.000000e+00> : vector<4x32xf32>
    %179 = tpu.matmul %178, %140, %cst_74 {dimension_numbers = #tpu.dot_dimension_numbers<[1], [0], [0], [1], [0, 0, 1, 1], [], []>} : vector<4x4xf32>, vector<4x32xf32>, vector<4x32xf32> -> vector<4x32xf32>
    %c0_75 = arith.constant 0 : index
    %c0_76 = arith.constant 0 : index
    %c0_77 = arith.constant 0 : index
    %180 = vector.load %arg10[%c0_75, %c0_76, %c0_77] : memref<3x32x32xf32, #tpu.memory_space<vmem>>, vector<1x32x32xf32>
    %181 = vector.shape_cast %180 : vector<1x32x32xf32> to vector<32x32xf32>
    %cst_78 = arith.constant dense<0.000000e+00> : vector<4x32xf32>
    %182 = tpu.matmul %139, %181, %cst_78 {dimension_numbers = #tpu.dot_dimension_numbers<[1], [0], [0], [1], [0, 0, 1, 1], [], []>} : vector<4x32xf32>, vector<32x32xf32>, vector<4x32xf32> -> vector<4x32xf32>
    %c1_79 = arith.constant 1 : index
    %c0_80 = arith.constant 0 : index
    %c0_81 = arith.constant 0 : index
    %183 = vector.load %arg10[%c1_79, %c0_80, %c0_81] : memref<3x32x32xf32, #tpu.memory_space<vmem>>, vector<1x32x32xf32>
    %184 = vector.shape_cast %183 : vector<1x32x32xf32> to vector<32x32xf32>
    %cst_82 = arith.constant dense<0.000000e+00> : vector<4x32xf32>
    %185 = tpu.matmul %140, %184, %cst_82 {dimension_numbers = #tpu.dot_dimension_numbers<[1], [0], [0], [1], [0, 0, 1, 1], [], []>} : vector<4x32xf32>, vector<32x32xf32>, vector<4x32xf32> -> vector<4x32xf32>
    %186 = arith.addf %182, %185 : vector<4x32xf32>
    %c2 = arith.constant 2 : index
    %c0_83 = arith.constant 0 : index
    %c0_84 = arith.constant 0 : index
    %187 = vector.load %arg10[%c2, %c0_83, %c0_84] : memref<3x32x32xf32, #tpu.memory_space<vmem>>, vector<1x32x32xf32>
    %188 = vector.shape_cast %187 : vector<1x32x32xf32> to vector<32x32xf32>
    %cst_85 = arith.constant dense<0.000000e+00> : vector<4x32xf32>
    %189 = tpu.matmul %179, %188, %cst_85 {dimension_numbers = #tpu.dot_dimension_numbers<[1], [0], [0], [1], [0, 0, 1, 1], [], []>} : vector<4x32xf32>, vector<32x32xf32>, vector<4x32xf32> -> vector<4x32xf32>
    %190 = arith.addf %186, %189 : vector<4x32xf32>
    %c0_86 = arith.constant 0 : index
    %c0_87 = arith.constant 0 : index
    %191 = vector.load %arg11[%c0_86, %c0_87] : memref<1x32xf32, #tpu.memory_space<vmem>>, vector<1x32xf32>
    %192 = vector.broadcast %191 : vector<1x32xf32> to vector<4x32xf32>
    %193 = arith.addf %190, %192 : vector<4x32xf32>
    %cst_88 = arith.constant 5.000000e-01 : f32
    %194 = vector.broadcast %cst_88 : f32 to vector<4x32xf32>
    %195 = arith.mulf %194, %193 : vector<4x32xf32>
    %196 = arith.mulf %193, %193 : vector<4x32xf32>
    %197 = arith.mulf %196, %193 : vector<4x32xf32>
    %cst_89 = arith.constant 4.471500e-02 : f32
    %198 = vector.broadcast %cst_89 : f32 to vector<4x32xf32>
    %199 = arith.mulf %198, %197 : vector<4x32xf32>
    %200 = arith.addf %193, %199 : vector<4x32xf32>
    %cst_90 = arith.constant 0.797884583 : f32
    %201 = vector.broadcast %cst_90 : f32 to vector<4x32xf32>
    %202 = arith.mulf %201, %200 : vector<4x32xf32>
    %203 = math.tanh %202 : vector<4x32xf32>
    %cst_91 = arith.constant 1.000000e+00 : f32
    %204 = vector.broadcast %cst_91 : f32 to vector<4x32xf32>
    %205 = arith.addf %204, %203 : vector<4x32xf32>
    %206 = arith.mulf %195, %205 : vector<4x32xf32>
    %c0_92 = arith.constant 0 : index
    %c0_93 = arith.constant 0 : index
    %207 = vector.load %arg12[%c0_92, %c0_93] : memref<32x3xf32, #tpu.memory_space<vmem>>, vector<32x3xf32>
    %cst_94 = arith.constant dense<0.000000e+00> : vector<4x3xf32>
    %208 = tpu.matmul %206, %207, %cst_94 {dimension_numbers = #tpu.dot_dimension_numbers<[1], [0], [0], [1], [0, 0, 1, 1], [], []>} : vector<4x32xf32>, vector<32x3xf32>, vector<4x3xf32> -> vector<4x3xf32>
    %c0_95 = arith.constant 0 : index
    %c0_96 = arith.constant 0 : index
    %209 = vector.load %arg13[%c0_95, %c0_96] : memref<1x3xf32, #tpu.memory_space<vmem>>, vector<1x3xf32>
    %210 = vector.broadcast %209 : vector<1x3xf32> to vector<4x3xf32>
    %211 = arith.addf %208, %210 : vector<4x3xf32>
    %cst_97 = arith.constant dense<0xFF800000> : vector<4xf32>
    %212 = vector.multi_reduction <maximumf>, %211, %cst_97 [1] : vector<4x3xf32> to vector<4xf32>
    %213 = vector.shape_cast %212 : vector<4xf32> to vector<4x1xf32>
    %214 = vector.broadcast %213 : vector<4x1xf32> to vector<4x3xf32>
    %215 = arith.subf %211, %214 : vector<4x3xf32>
    %216 = math.exp %215 : vector<4x3xf32>
    %cst_98 = arith.constant dense<0.000000e+00> : vector<4xf32>
    %217 = vector.multi_reduction <add>, %216, %cst_98 [1] : vector<4x3xf32> to vector<4xf32>
    %218 = vector.shape_cast %217 : vector<4xf32> to vector<4x1xf32>
    %219 = tpu.reciprocal %218 {approx = true} : vector<4x1xf32> -> vector<4x1xf32>
    %220 = vector.broadcast %219 : vector<4x1xf32> to vector<4x3xf32>
    %221 = arith.mulf %216, %220 : vector<4x3xf32>
    %222 = vector.extract_strided_slice %221 {offsets = [0, 0], sizes = [4, 1], strides = [1, 1]} : vector<4x3xf32> to vector<4x1xf32>
    %223 = vector.broadcast %222 : vector<4x1xf32> to vector<4x32xf32>
    %224 = arith.mulf %223, %139 : vector<4x32xf32>
    %225 = vector.extract_strided_slice %221 {offsets = [0, 1], sizes = [4, 1], strides = [1, 1]} : vector<4x3xf32> to vector<4x1xf32>
    %226 = vector.broadcast %225 : vector<4x1xf32> to vector<4x32xf32>
    %227 = arith.mulf %226, %140 : vector<4x32xf32>
    %228 = arith.addf %224, %227 : vector<4x32xf32>
    %229 = vector.extract_strided_slice %221 {offsets = [0, 2], sizes = [4, 1], strides = [1, 1]} : vector<4x3xf32> to vector<4x1xf32>
    %230 = vector.broadcast %229 : vector<4x1xf32> to vector<4x32xf32>
    %231 = arith.mulf %230, %179 : vector<4x32xf32>
    %232 = arith.addf %228, %231 : vector<4x32xf32>
    %c0_99 = arith.constant 0 : index
    %c0_100 = arith.constant 0 : index
    %233 = vector.load %arg14[%c0_99, %c0_100] : memref<32x32xf32, #tpu.memory_space<vmem>>, vector<32x32xf32>
    %cst_101 = arith.constant dense<0.000000e+00> : vector<4x32xf32>
    %234 = tpu.matmul %141, %233, %cst_101 {dimension_numbers = #tpu.dot_dimension_numbers<[1], [0], [0], [1], [0, 0, 1, 1], [], []>} : vector<4x32xf32>, vector<32x32xf32>, vector<4x32xf32> -> vector<4x32xf32>
    %c0_102 = arith.constant 0 : index
    %c0_103 = arith.constant 0 : index
    %235 = vector.load %arg15[%c0_102, %c0_103] : memref<1x32xf32, #tpu.memory_space<vmem>>, vector<1x32xf32>
    %236 = vector.broadcast %235 : vector<1x32xf32> to vector<4x32xf32>
    %237 = arith.addf %234, %236 : vector<4x32xf32>
    %c0_104 = arith.constant 0 : index
    %c0_105 = arith.constant 0 : index
    %238 = vector.load %arg16[%c0_104, %c0_105] : memref<1x32xf32, #tpu.memory_space<vmem>>, vector<1x32xf32>
    %c0_106 = arith.constant 0 : index
    %c0_107 = arith.constant 0 : index
    %239 = vector.load %arg17[%c0_106, %c0_107] : memref<1x32xf32, #tpu.memory_space<vmem>>, vector<1x32xf32>
    %cst_108 = arith.constant dense<0.000000e+00> : vector<4xf32>
    %240 = vector.multi_reduction <add>, %237, %cst_108 [1] : vector<4x32xf32> to vector<4xf32>
    %241 = vector.shape_cast %240 : vector<4xf32> to vector<4x1xf32>
    %cst_109 = arith.constant 3.200000e+01 : f32
    %242 = vector.broadcast %cst_109 : f32 to vector<4x1xf32>
    %243 = arith.divf %241, %242 : vector<4x1xf32>
    %244 = vector.broadcast %243 : vector<4x1xf32> to vector<4x32xf32>
    %245 = arith.subf %237, %244 : vector<4x32xf32>
    %246 = arith.mulf %245, %245 : vector<4x32xf32>
    %cst_110 = arith.constant dense<0.000000e+00> : vector<4xf32>
    %247 = vector.multi_reduction <add>, %246, %cst_110 [1] : vector<4x32xf32> to vector<4xf32>
    %248 = vector.shape_cast %247 : vector<4xf32> to vector<4x1xf32>
    %cst_111 = arith.constant 3.200000e+01 : f32
    %249 = vector.broadcast %cst_111 : f32 to vector<4x1xf32>
    %250 = arith.divf %248, %249 : vector<4x1xf32>
    %251 = vector.broadcast %243 : vector<4x1xf32> to vector<4x32xf32>
    %252 = arith.subf %237, %251 : vector<4x32xf32>
    %cst_112 = arith.constant 9.99999974E-6 : f32
    %253 = vector.broadcast %cst_112 : f32 to vector<4x1xf32>
    %254 = arith.addf %250, %253 : vector<4x1xf32>
    %255 = math.rsqrt %254 : vector<4x1xf32>
    %256 = vector.broadcast %255 : vector<4x1xf32> to vector<4x32xf32>
    %257 = arith.mulf %252, %256 : vector<4x32xf32>
    %258 = vector.broadcast %238 : vector<1x32xf32> to vector<4x32xf32>
    %259 = arith.mulf %257, %258 : vector<4x32xf32>
    %260 = vector.broadcast %239 : vector<1x32xf32> to vector<4x32xf32>
    %261 = arith.addf %259, %260 : vector<4x32xf32>
    %262 = arith.addf %232, %261 : vector<4x32xf32>
    %c0_113 = arith.constant 0 : index
    %c0_114 = arith.constant 0 : index
    %263 = vector.load %arg18[%c0_113, %c0_114] : memref<1x32xf32, #tpu.memory_space<vmem>>, vector<1x32xf32>
    %c0_115 = arith.constant 0 : index
    %c0_116 = arith.constant 0 : index
    %264 = vector.load %arg19[%c0_115, %c0_116] : memref<1x32xf32, #tpu.memory_space<vmem>>, vector<1x32xf32>
    %cst_117 = arith.constant dense<0.000000e+00> : vector<4xf32>
    %265 = vector.multi_reduction <add>, %262, %cst_117 [1] : vector<4x32xf32> to vector<4xf32>
    %266 = vector.shape_cast %265 : vector<4xf32> to vector<4x1xf32>
    %cst_118 = arith.constant 3.200000e+01 : f32
    %267 = vector.broadcast %cst_118 : f32 to vector<4x1xf32>
    %268 = arith.divf %266, %267 : vector<4x1xf32>
    %269 = vector.broadcast %268 : vector<4x1xf32> to vector<4x32xf32>
    %270 = arith.subf %262, %269 : vector<4x32xf32>
    %271 = arith.mulf %270, %270 : vector<4x32xf32>
    %cst_119 = arith.constant dense<0.000000e+00> : vector<4xf32>
    %272 = vector.multi_reduction <add>, %271, %cst_119 [1] : vector<4x32xf32> to vector<4xf32>
    %273 = vector.shape_cast %272 : vector<4xf32> to vector<4x1xf32>
    %cst_120 = arith.constant 3.200000e+01 : f32
    %274 = vector.broadcast %cst_120 : f32 to vector<4x1xf32>
    %275 = arith.divf %273, %274 : vector<4x1xf32>
    %276 = vector.broadcast %268 : vector<4x1xf32> to vector<4x32xf32>
    %277 = arith.subf %262, %276 : vector<4x32xf32>
    %cst_121 = arith.constant 9.99999974E-6 : f32
    %278 = vector.broadcast %cst_121 : f32 to vector<4x1xf32>
    %279 = arith.addf %275, %278 : vector<4x1xf32>
    %280 = math.rsqrt %279 : vector<4x1xf32>
    %281 = vector.broadcast %280 : vector<4x1xf32> to vector<4x32xf32>
    %282 = arith.mulf %277, %281 : vector<4x32xf32>
    %283 = vector.broadcast %263 : vector<1x32xf32> to vector<4x32xf32>
    %284 = arith.mulf %282, %283 : vector<4x32xf32>
    %285 = vector.broadcast %264 : vector<1x32xf32> to vector<4x32xf32>
    %286 = arith.addf %284, %285 : vector<4x32xf32>
    %c0_122 = arith.constant 0 : index
    %c0_123 = arith.constant 0 : index
    %c0_124 = arith.constant 0 : index
    %287 = vector.load %arg20[%c0_122, %c0_123, %c0_124] : memref<1x4x32xf32, #tpu.memory_space<vmem>>, vector<1x4x32xf32>
    %288 = vector.shape_cast %287 : vector<1x4x32xf32> to vector<4x32xf32>
    %289 = vector.shape_cast %286 : vector<4x32xf32> to vector<1x4x32xf32>
    tpu.vector_store %arg20[%c0_122, %c0_123, %c0_124], %289 {strides = array<i32>} : memref<1x4x32xf32, #tpu.memory_space<vmem>>, vector<1x4x32xf32>,
    return
  }
  func.func @transform_0(%arg0: i32) -> (i32, i32, i32) {
    %c0_i32 = arith.constant 0 : i32
    %c0_i32_0 = arith.constant 0 : i32
    %c0_i32_1 = arith.constant 0 : i32
    return %arg0, %c0_i32, %c0_i32_0 : i32, i32, i32
  }
  func.func @transform_1(%arg0: i32) -> (i32, i32, i32) {
    %c0_i32 = arith.constant 0 : i32
    %c0_i32_0 = arith.constant 0 : i32
    %c0_i32_1 = arith.constant 0 : i32
    %c0_i32_2 = arith.constant 0 : i32
    return %c0_i32, %c0_i32_0, %c0_i32_1 : i32, i32, i32
  }
  func.func @transform_2(%arg0: i32) -> (i32, i32, i32) {
    %c0_i32 = arith.constant 0 : i32
    %c0_i32_0 = arith.constant 0 : i32
    %c0_i32_1 = arith.constant 0 : i32
    %c0_i32_2 = arith.constant 0 : i32
    return %c0_i32, %c0_i32_0, %c0_i32_1 : i32, i32, i32
  }
  func.func @transform_3(%arg0: i32) -> (i32, i32, i32) {
    %c0_i32 = arith.constant 0 : i32
    %c0_i32_0 = arith.constant 0 : i32
    %c0_i32_1 = arith.constant 0 : i32
    %c0_i32_2 = arith.constant 0 : i32
    return %c0_i32, %c0_i32_0, %c0_i32_1 : i32, i32, i32
  }
  func.func @transform_4(%arg0: i32) -> (i32, i32, i32) {
    %c0_i32 = arith.constant 0 : i32
    %c0_i32_0 = arith.constant 0 : i32
    %c0_i32_1 = arith.constant 0 : i32
    %c0_i32_2 = arith.constant 0 : i32
    return %c0_i32, %c0_i32_0, %c0_i32_1 : i32, i32, i32
  }
  func.func @transform_5(%arg0: i32) -> (i32, i32) {
    %c0_i32 = arith.constant 0 : i32
    %c0_i32_0 = arith.constant 0 : i32
    %c0_i32_1 = arith.constant 0 : i32
    return %c0_i32, %c0_i32_0 : i32, i32
  }
  func.func @transform_6(%arg0: i32) -> (i32, i32) {
    %c0_i32 = arith.constant 0 : i32
    %c0_i32_0 = arith.constant 0 : i32
    %c0_i32_1 = arith.constant 0 : i32
    return %c0_i32, %c0_i32_0 : i32, i32
  }
  func.func @transform_7(%arg0: i32) -> (i32, i32) {
    %c0_i32 = arith.constant 0 : i32
    %c0_i32_0 = arith.constant 0 : i32
    %c0_i32_1 = arith.constant 0 : i32
    return %c0_i32, %c0_i32_0 : i32, i32
  }
  func.func @transform_8(%arg0: i32) -> (i32, i32) {
    %c0_i32 = arith.constant 0 : i32
    %c0_i32_0 = arith.constant 0 : i32
    %c0_i32_1 = arith.constant 0 : i32
    return %c0_i32, %c0_i32_0 : i32, i32
  }
  func.func @transform_9(%arg0: i32) -> (i32, i32, i32) {
    %c0_i32 = arith.constant 0 : i32
    %c0_i32_0 = arith.constant 0 : i32
    %c0_i32_1 = arith.constant 0 : i32
    %c0_i32_2 = arith.constant 0 : i32
    return %c0_i32, %c0_i32_0, %c0_i32_1 : i32, i32, i32
  }
  func.func @transform_10(%arg0: i32) -> (i32, i32) {
    %c0_i32 = arith.constant 0 : i32
    %c0_i32_0 = arith.constant 0 : i32
    %c0_i32_1 = arith.constant 0 : i32
    return %c0_i32, %c0_i32_0 : i32, i32
  }
  func.func @transform_11(%arg0: i32) -> (i32, i32) {
    %c0_i32 = arith.constant 0 : i32
    %c0_i32_0 = arith.constant 0 : i32
    %c0_i32_1 = arith.constant 0 : i32
    return %c0_i32, %c0_i32_0 : i32, i32
  }
  func.func @transform_12(%arg0: i32) -> (i32, i32) {
    %c0_i32 = arith.constant 0 : i32
    %c0_i32_0 = arith.constant 0 : i32
    %c0_i32_1 = arith.constant 0 : i32
    return %c0_i32, %c0_i32_0 : i32, i32
  }
  func.func @transform_13(%arg0: i32) -> (i32, i32) {
    %c0_i32 = arith.constant 0 : i32
    %c0_i32_0 = arith.constant 0 : i32
    %c0_i32_1 = arith.constant 0 : i32
    return %c0_i32, %c0_i32_0 : i32, i32
  }
  func.func @transform_14(%arg0: i32) -> (i32, i32) {
    %c0_i32 = arith.constant 0 : i32
    %c0_i32_0 = arith.constant 0 : i32
    %c0_i32_1 = arith.constant 0 : i32
    return %c0_i32, %c0_i32_0 : i32, i32
  }
  func.func @transform_15(%arg0: i32) -> (i32, i32) {
    %c0_i32 = arith.constant 0 : i32
    %c0_i32_0 = arith.constant 0 : i32
    %c0_i32_1 = arith.constant 0 : i32
    return %c0_i32, %c0_i32_0 : i32, i32
  }
  func.func @transform_16(%arg0: i32) -> (i32, i32) {
    %c0_i32 = arith.constant 0 : i32
    %c0_i32_0 = arith.constant 0 : i32
    %c0_i32_1 = arith.constant 0 : i32
    return %c0_i32, %c0_i32_0 : i32, i32
  }
  func.func @transform_17(%arg0: i32) -> (i32, i32) {
    %c0_i32 = arith.constant 0 : i32
    %c0_i32_0 = arith.constant 0 : i32
    %c0_i32_1 = arith.constant 0 : i32
    return %c0_i32, %c0_i32_0 : i32, i32
  }
  func.func @transform_18(%arg0: i32) -> (i32, i32) {
    %c0_i32 = arith.constant 0 : i32
    %c0_i32_0 = arith.constant 0 : i32
    %c0_i32_1 = arith.constant 0 : i32
    return %c0_i32, %c0_i32_0 : i32, i32
  }
  func.func @transform_19(%arg0: i32) -> (i32, i32, i32) {
    %c0_i32 = arith.constant 0 : i32
    %c0_i32_0 = arith.constant 0 : i32
    %c0_i32_1 = arith.constant 0 : i32
    return %arg0, %c0_i32, %c0_i32_0 : i32, i32, i32
  }
}

</mosaic_0001>

<llo_original>
// kernel: triad_forward.1
$region0: #{triad_forward.1}
  #allocation0 [shape = 'u32[]', space=smem, size = 0x4, offset = 0x4, fixed_abs, tag = 'smem constant byte address 0x4 - core index']
  #allocation1 [shape = 'u32[144,128]{1,0:T(1,128)}', space=vmem, size = 0x12000, scoped, tag = 'internal scratch']
  %s0 = inlined_call_operand.vmem [shape: f32[2,32,32], index: 0, kind: input, shape index: {}]
  %s1 = inlined_call_operand.vmem [shape: f32[2,3,32], index: 1, kind: input, shape index: {}]
  %s2 = inlined_call_operand.vmem [shape: f32[2,1,32], index: 2, kind: input, shape index: {}]
  %s3 = inlined_call_operand.vmem [shape: f32[2,32,32], index: 3, kind: input, shape index: {}]
  %s4 = inlined_call_operand.vmem [shape: f32[2,1,32], index: 4, kind: input, shape index: {}]
  %s5 = inlined_call_operand.vmem [shape: f32[32,16], index: 5, kind: input, shape index: {}]
  %s6 = inlined_call_operand.vmem [shape: f32[1,16], index: 6, kind: input, shape index: {}]
  %s7 = inlined_call_operand.vmem [shape: f32[16,4], index: 7, kind: input, shape index: {}]
  %s8 = inlined_call_operand.vmem [shape: f32[1,4], index: 8, kind: input, shape index: {}]
  %s9 = inlined_call_operand.vmem [shape: f32[3,32,32], index: 9, kind: input, shape index: {}]
  %s10 = inlined_call_operand.vmem [shape: f32[1,32], index: 10, kind: input, shape index: {}]
  %s11 = inlined_call_operand.vmem [shape: f32[32,3], index: 11, kind: input, shape index: {}]
  %s12 = inlined_call_operand.vmem [shape: f32[1,3], index: 12, kind: input, shape index: {}]
  %s13 = inlined_call_operand.vmem [shape: f32[32,32], index: 13, kind: input, shape index: {}]
  %s14 = inlined_call_operand.vmem [shape: f32[1,32], index: 14, kind: input, shape index: {}]
  %s15 = inlined_call_operand.vmem [shape: f32[1,32], index: 15, kind: input, shape index: {}]
  %s16 = inlined_call_operand.vmem [shape: f32[1,32], index: 16, kind: input, shape index: {}]
  %s17 = inlined_call_operand.vmem [shape: f32[1,32], index: 17, kind: input, shape index: {}]
  %s18 = inlined_call_operand.vmem [shape: f32[1,32], index: 18, kind: input, shape index: {}]
  %s19 = inlined_call_operand.hbm [shape: f32[2,4,32], index: 19, kind: output, shape index: {}]
  %s20 = sld [smem:[#allocation0]]
  $region109: #{triad_forward.1} parent=0
    _
  %s22 = ssub.s32 1, %s20
  %s23 = scalar_select 0, %s22, %s20
  $region1: #{triad_forward.1} parent=0
    #allocation2 [shape = 'u8[4096]{0}', space=vmem, size = 0x1000, scoped, tag = 'output window, operand 0']
    #allocation3 [shape = 's32[2]{0}', space=sflag, size = 0x8, scoped, tag = 'scoped memory for triad_forward.1']
    %24 = vsyncpa [#allocation3], 0
    %s25 = scalar_lea.sflag [#allocation3], 1
    %26 = vsyncpa %s25, 0
    loop: start=0, step=1, limit=4
    $region2: #{triad_forward.1} parent=1 // loop_pre_header
      _
    $region3: #{triad_forward.1} parent=1 // loop_header
      %s28 = sphi 0, %s32
      %p29 = scmp.ge.s32.totalorder %s28, 4
      %s38 = sphi 0, %s40
      %s41 = sphi 0, %s38
      %s42 = sphi 0, %s41
      %s58 = sphi 0, %s42
      %s62 = sphi 0, %s62
      %s64 = sphi 0, %s62
      %s65 = sphi 0, %s64
      %s79 = sphi 0, %s65
      %s83 = sphi 0, %s83
      %s85 = sphi 0, %s83
      %s86 = sphi 0, %s85
      %s100 = sphi 0, %s86
      %s104 = sphi 0, %s104
      %s106 = sphi 0, %s104
      %s107 = sphi 0, %s106
      %s121 = sphi 0, %s107
      %s125 = sphi 0, %s125
      %s127 = sphi 0, %s125
      %s128 = sphi 0, %s127
      %s142 = sphi 0, %s128
      %s146 = sphi 0, %s146
      %s148 = sphi 0, %s146
      %s149 = sphi 0, %s148
      %s163 = sphi 0, %s149
      %s167 = sphi 0, %s167
      %s169 = sphi 0, %s167
      %s170 = sphi 0, %s169
      %s184 = sphi 0, %s170
      %s188 = sphi 0, %s188
      %s190 = sphi 0, %s188
      %s191 = sphi 0, %s190
      %s205 = sphi 0, %s191
      %s209 = sphi 0, %s209
      %s211 = sphi 0, %s209
      %s212 = sphi 0, %s211
      %s226 = sphi 0, %s212
      %s230 = sphi 0, %s230
      %s232 = sphi 0, %s230
      %s233 = sphi 0, %s232
      %s247 = sphi 0, %s233
      %s251 = sphi 0, %s251
      %s253 = sphi 0, %s251
      %s254 = sphi 0, %s253
      %s268 = sphi 0, %s254
      %s272 = sphi 0, %s272
      %s274 = sphi 0, %s272
      %s275 = sphi 0, %s274
      %s289 = sphi 0, %s275
      %s293 = sphi 0, %s293
      %s295 = sphi 0, %s293
      %s296 = sphi 0, %s295
      %s310 = sphi 0, %s296
      %s314 = sphi 0, %s314
      %s316 = sphi 0, %s314
      %s317 = sphi 0, %s316
      %s331 = sphi 0, %s317
      %s335 = sphi 0, %s335
      %s337 = sphi 0, %s335
      %s338 = sphi 0, %s337
      %s352 = sphi 0, %s338
      %s356 = sphi 0, %s356
      %s358 = sphi 0, %s356
      %s359 = sphi 0, %s358
      %s373 = sphi 0, %s359
      %s377 = sphi 0, %s377
      %s379 = sphi 0, %s377
      %s380 = sphi 0, %s379
      %s394 = sphi 0, %s380
      %s398 = sphi 0, %s398
      %s400 = sphi 0, %s398
      %s401 = sphi 0, %s400
      %s415 = sphi 0, %s401
      %s419 = sphi 0, %s419
      %s421 = sphi 0, %s419
      %s422 = sphi 0, %s421
      %s436 = sphi 0, %s422
      %s442 = sphi 0, %s444
      %s445 = sphi 0, %s442
      %s446 = sphi 0, %s445
      %s462 = sphi 0, %s446
    $region4: #{triad_forward.1} parent=1 // loop_header_branch
      %31 = sbr.rel (%p29) target = $region8
    $region5: #{triad_forward.1} parent=1 // loop_body
      %s33 = ssub.s32 %s28, 1
      %s34 = ssub.s32 %s28, 2
      %s35 = sadd.s32 %s28, 1
      %s36 = ssub.s32 %s28, %s35
      %p37 = scmp.eq.s32.totalorder %s36, 0
      %s39 = sadd.s32 %s38, 1
      %s40 = scalar_select %p37, %s38, %s39
      %p43 = pneg %p37
      %p44 = scmp.eq.s32.totalorder %s28, 1
      %p45 = por %p43, %p44
      %p46 = scmp.ne.s32.totalorder %s38, %s41
      %p47 = scmp.eq.s32.totalorder %s28, 0
      %p48 = por %p46, %p47
      %p49 = scmp.ne.s32.totalorder %s38, %s41
      %p50 = scmp.eq.s32.totalorder %s33, 1
      %p51 = por %p49, %p50
      %p52 = scmp.ne.s32.totalorder %s41, %s42
      %p53 = scmp.eq.s32.totalorder %s33, 0
      %p54 = por %p52, %p53
      %p55 = scmp.ne.s32.totalorder %s41, %s42
      %p56 = scmp.eq.s32.totalorder %s34, 1
      %p57 = por %p55, %p56
      %p59 = scmp.ne.s32.totalorder %s42, %s58
      %p60 = scmp.eq.s32.totalorder %s34, 0
      %p61 = por %p59, %p60
      %s63 = sadd.s32 %s62, 1
      %p66 = scmp.eq.s32.totalorder %s28, 1
      %p67 = scmp.ne.s32.totalorder %s62, %s64
      %p68 = scmp.eq.s32.totalorder %s28, 0
      %p69 = por %p67, %p68
      %p70 = scmp.ne.s32.totalorder %s62, %s64
      %p71 = scmp.eq.s32.totalorder %s33, 1
      %p72 = por %p70, %p71
      %p73 = scmp.ne.s32.totalorder %s64, %s65
      %p74 = scmp.eq.s32.totalorder %s33, 0
      %p75 = por %p73, %p74
      %p76 = scmp.ne.s32.totalorder %s64, %s65
      %p77 = scmp.eq.s32.totalorder %s34, 1
      %p78 = por %p76, %p77
      %p80 = scmp.ne.s32.totalorder %s65, %s79
      %p81 = scmp.eq.s32.totalorder %s34, 0
      %p82 = por %p80, %p81
      %s84 = sadd.s32 %s83, 1
      %p87 = scmp.eq.s32.totalorder %s28, 1
      %p88 = scmp.ne.s32.totalorder %s83, %s85
      %p89 = scmp.eq.s32.totalorder %s28, 0
      %p90 = por %p88, %p89
      %p91 = scmp.ne.s32.totalorder %s83, %s85
      %p92 = scmp.eq.s32.totalorder %s33, 1
      %p93 = por %p91, %p92
      %p94 = scmp.ne.s32.totalorder %s85, %s86
      %p95 = scmp.eq.s32.totalorder %s33, 0
      %p96 = por %p94, %p95
      %p97 = scmp.ne.s32.totalorder %s85, %s86
      %p98 = scmp.eq.s32.totalorder %s34, 1
      %p99 = por %p97, %p98
      %p101 = scmp.ne.s32.totalorder %s86, %s100
      %p102 = scmp.eq.s32.totalorder %s34, 0
      %p103 = por %p101, %p102
      %s105 = sadd.s32 %s104, 1
      %p108 = scmp.eq.s32.totalorder %s28, 1
      %p109 = scmp.ne.s32.totalorder %s104, %s106
      %p110 = scmp.eq.s32.totalorder %s28, 0
      %p111 = por %p109, %p110
      %p112 = scmp.ne.s32.totalorder %s104, %s106
      %p113 = scmp.eq.s32.totalorder %s33, 1
      %p114 = por %p112, %p113
      %p115 = scmp.ne.s32.totalorder %s106, %s107
      %p116 = scmp.eq.s32.totalorder %s33, 0
      %p117 = por %p115, %p116
      %p118 = scmp.ne.s32.totalorder %s106, %s107
      %p119 = scmp.eq.s32.totalorder %s34, 1
      %p120 = por %p118, %p119
      %p122 = scmp.ne.s32.totalorder %s107, %s121
      %p123 = scmp.eq.s32.totalorder %s34, 0
      %p124 = por %p122, %p123
      %s126 = sadd.s32 %s125, 1
      %p129 = scmp.eq.s32.totalorder %s28, 1
      %p130 = scmp.ne.s32.totalorder %s125, %s127
      %p131 = scmp.eq.s32.totalorder %s28, 0
      %p132 = por %p130, %p131
      %p133 = scmp.ne.s32.totalorder %s125, %s127
      %p134 = scmp.eq.s32.totalorder %s33, 1
      %p135 = por %p133, %p134
      %p136 = scmp.ne.s32.totalorder %s127, %s128
      %p137 = scmp.eq.s32.totalorder %s33, 0
      %p138 = por %p136, %p137
      %p139 = scmp.ne.s32.totalorder %s127, %s128
      %p140 = scmp.eq.s32.totalorder %s34, 1
      %p141 = por %p139, %p140
      %p143 = scmp.ne.s32.totalorder %s128, %s142
      %p144 = scmp.eq.s32.totalorder %s34, 0
      %p145 = por %p143, %p144
      %s147 = sadd.s32 %s146, 1
      %p150 = scmp.eq.s32.totalorder %s28, 1
      %p151 = scmp.ne.s32.totalorder %s146, %s148
      %p152 = scmp.eq.s32.totalorder %s28, 0
      %p153 = por %p151, %p152
      %p154 = scmp.ne.s32.totalorder %s146, %s148
      %p155 = scmp.eq.s32.totalorder %s33, 1
      %p156 = por %p154, %p155
      %p157 = scmp.ne.s32.totalorder %s148, %s149
      %p158 = scmp.eq.s32.totalorder %s33, 0
      %p159 = por %p157, %p158
      %p160 = scmp.ne.s32.totalorder %s148, %s149
      %p161 = scmp.eq.s32.totalorder %s34, 1
      %p162 = por %p160, %p161
      %p164 = scmp.ne.s32.totalorder %s149, %s163
      %p165 = scmp.eq.s32.totalorder %s34, 0
      %p166 = por %p164, %p165
      %s168 = sadd.s32 %s167, 1
      %p171 = scmp.eq.s32.totalorder %s28, 1
      %p172 = scmp.ne.s32.totalorder %s167, %s169
      %p173 = scmp.eq.s32.totalorder %s28, 0
      %p174 = por %p172, %p173
      %p175 = scmp.ne.s32.totalorder %s167, %s169
      %p176 = scmp.eq.s32.totalorder %s33, 1
      %p177 = por %p175, %p176
      %p178 = scmp.ne.s32.totalorder %s169, %s170
      %p179 = scmp.eq.s32.totalorder %s33, 0
      %p180 = por %p178, %p179
      %p181 = scmp.ne.s32.totalorder %s169, %s170
      %p182 = scmp.eq.s32.totalorder %s34, 1
      %p183 = por %p181, %p182
      %p185 = scmp.ne.s32.totalorder %s170, %s184
      %p186 = scmp.eq.s32.totalorder %s34, 0
      %p187 = por %p185, %p186
      %s189 = sadd.s32 %s188, 1
      %p192 = scmp.eq.s32.totalorder %s28, 1
      %p193 = scmp.ne.s32.totalorder %s188, %s190
      %p194 = scmp.eq.s32.totalorder %s28, 0
      %p195 = por %p193, %p194
      %p196 = scmp.ne.s32.totalorder %s188, %s190
      %p197 = scmp.eq.s32.totalorder %s33, 1
      %p198 = por %p196, %p197
      %p199 = scmp.ne.s32.totalorder %s190, %s191
      %p200 = scmp.eq.s32.totalorder %s33, 0
      %p201 = por %p199, %p200
      %p202 = scmp.ne.s32.totalorder %s190, %s191
      %p203 = scmp.eq.s32.totalorder %s34, 1
      %p204 = por %p202, %p203
      %p206 = scmp.ne.s32.totalorder %s191, %s205
      %p207 = scmp.eq.s32.totalorder %s34, 0
      %p208 = por %p206, %p207
      %s210 = sadd.s32 %s209, 1
      %p213 = scmp.eq.s32.totalorder %s28, 1
      %p214 = scmp.ne.s32.totalorder %s209, %s211
      %p215 = scmp.eq.s32.totalorder %s28, 0
      %p216 = por %p214, %p215
      %p217 = scmp.ne.s32.totalorder %s209, %s211
      %p218 = scmp.eq.s32.totalorder %s33, 1
      %p219 = por %p217, %p218
      %p220 = scmp.ne.s32.totalorder %s211, %s212
      %p221 = scmp.eq.s32.totalorder %s33, 0
      %p222 = por %p220, %p221
      %p223 = scmp.ne.s32.totalorder %s211, %s212
      %p224 = scmp.eq.s32.totalorder %s34, 1
      %p225 = por %p223, %p224
      %p227 = scmp.ne.s32.totalorder %s212, %s226
      %p228 = scmp.eq.s32.totalorder %s34, 0
      %p229 = por %p227, %p228
      %s231 = sadd.s32 %s230, 1
      %p234 = scmp.eq.s32.totalorder %s28, 1
      %p235 = scmp.ne.s32.totalorder %s230, %s232
      %p236 = scmp.eq.s32.totalorder %s28, 0
      %p237 = por %p235, %p236
      %p238 = scmp.ne.s32.totalorder %s230, %s232
      %p239 = scmp.eq.s32.totalorder %s33, 1
      %p240 = por %p238, %p239
      %p241 = scmp.ne.s32.totalorder %s232, %s233
      %p242 = scmp.eq.s32.totalorder %s33, 0
      %p243 = por %p241, %p242
      %p244 = scmp.ne.s32.totalorder %s232, %s233
      %p245 = scmp.eq.s32.totalorder %s34, 1
      %p246 = por %p244, %p245
      %p248 = scmp.ne.s32.totalorder %s233, %s247
      %p249 = scmp.eq.s32.totalorder %s34, 0
      %p250 = por %p248, %p249
      %s252 = sadd.s32 %s251, 1
      %p255 = scmp.eq.s32.totalorder %s28, 1
      %p256 = scmp.ne.s32.totalorder %s251, %s253
      %p257 = scmp.eq.s32.totalorder %s28, 0
      %p258 = por %p256, %p257
      %p259 = scmp.ne.s32.totalorder %s251, %s253
      %p260 = scmp.eq.s32.totalorder %s33, 1
      %p261 = por %p259, %p260
      %p262 = scmp.ne.s32.totalorder %s253, %s254
      %p263 = scmp.eq.s32.totalorder %s33, 0
      %p264 = por %p262, %p263
      %p265 = scmp.ne.s32.totalorder %s253, %s254
      %p266 = scmp.eq.s32.totalorder %s34, 1
      %p267 = por %p265, %p266
      %p269 = scmp.ne.s32.totalorder %s254, %s268
      %p270 = scmp.eq.s32.totalorder %s34, 0
      %p271 = por %p269, %p270
      %s273 = sadd.s32 %s272, 1
      %p276 = scmp.eq.s32.totalorder %s28, 1
      %p277 = scmp.ne.s32.totalorder %s272, %s274
      %p278 = scmp.eq.s32.totalorder %s28, 0
      %p279 = por %p277, %p278
      %p280 = scmp.ne.s32.totalorder %s272, %s274
      %p281 = scmp.eq.s32.totalorder %s33, 1
      %p282 = por %p280, %p281
      %p283 = scmp.ne.s32.totalorder %s274, %s275
      %p284 = scmp.eq.s32.totalorder %s33, 0
      %p285 = por %p283, %p284
      %p286 = scmp.ne.s32.totalorder %s274, %s275
      %p287 = scmp.eq.s32.totalorder %s34, 1
      %p288 = por %p286, %p287
      %p290 = scmp.ne.s32.totalorder %s275, %s289
      %p291 = scmp.eq.s32.totalorder %s34, 0
      %p292 = por %p290, %p291
      %s294 = sadd.s32 %s293, 1
      %p297 = scmp.eq.s32.totalorder %s28, 1
      %p298 = scmp.ne.s32.totalorder %s293, %s295
      %p299 = scmp.eq.s32.totalorder %s28, 0
      %p300 = por %p298, %p299
      %p301 = scmp.ne.s32.totalorder %s293, %s295
      %p302 = scmp.eq.s32.totalorder %s33, 1
      %p303 = por %p301, %p302
      %p304 = scmp.ne.s32.totalorder %s295, %s296
      %p305 = scmp.eq.s32.totalorder %s33, 0
      %p306 = por %p304, %p305
      %p307 = scmp.ne.s32.totalorder %s295, %s296
      %p308 = scmp.eq.s32.totalorder %s34, 1
      %p309 = por %p307, %p308
      %p311 = scmp.ne.s32.totalorder %s296, %s310
      %p312 = scmp.eq.s32.totalorder %s34, 0
      %p313 = por %p311, %p312
      %s315 = sadd.s32 %s314, 1
      %p318 = scmp.eq.s32.totalorder %s28, 1
      %p319 = scmp.ne.s32.totalorder %s314, %s316
      %p320 = scmp.eq.s32.totalorder %s28, 0
      %p321 = por %p319, %p320
      %p322 = scmp.ne.s32.totalorder %s314, %s316
      %p323 = scmp.eq.s32.totalorder %s33, 1
      %p324 = por %p322, %p323
      %p325 = scmp.ne.s32.totalorder %s316, %s317
      %p326 = scmp.eq.s32.totalorder %s33, 0
      %p327 = por %p325, %p326
      %p328 = scmp.ne.s32.totalorder %s316, %s317
      %p329 = scmp.eq.s32.totalorder %s34, 1
      %p330 = por %p328, %p329
      %p332 = scmp.ne.s32.totalorder %s317, %s331
      %p333 = scmp.eq.s32.totalorder %s34, 0
      %p334 = por %p332, %p333
      %s336 = sadd.s32 %s335, 1
      %p339 = scmp.eq.s32.totalorder %s28, 1
      %p340 = scmp.ne.s32.totalorder %s335, %s337
      %p341 = scmp.eq.s32.totalorder %s28, 0
      %p342 = por %p340, %p341
      %p343 = scmp.ne.s32.totalorder %s335, %s337
      %p344 = scmp.eq.s32.totalorder %s33, 1
      %p345 = por %p343, %p344
      %p346 = scmp.ne.s32.totalorder %s337, %s338
      %p347 = scmp.eq.s32.totalorder %s33, 0
      %p348 = por %p346, %p347
      %p349 = scmp.ne.s32.totalorder %s337, %s338
      %p350 = scmp.eq.s32.totalorder %s34, 1
      %p351 = por %p349, %p350
      %p353 = scmp.ne.s32.totalorder %s338, %s352
      %p354 = scmp.eq.s32.totalorder %s34, 0
      %p355 = por %p353, %p354
      %s357 = sadd.s32 %s356, 1
      %p360 = scmp.eq.s32.totalorder %s28, 1
      %p361 = scmp.ne.s32.totalorder %s356, %s358
      %p362 = scmp.eq.s32.totalorder %s28, 0
      %p363 = por %p361, %p362
      %p364 = scmp.ne.s32.totalorder %s356, %s358
      %p365 = scmp.eq.s32.totalorder %s33, 1
      %p366 = por %p364, %p365
      %p367 = scmp.ne.s32.totalorder %s358, %s359
      %p368 = scmp.eq.s32.totalorder %s33, 0
      %p369 = por %p367, %p368
      %p370 = scmp.ne.s32.totalorder %s358, %s359
      %p371 = scmp.eq.s32.totalorder %s34, 1
      %p372 = por %p370, %p371
      %p374 = scmp.ne.s32.totalorder %s359, %s373
      %p375 = scmp.eq.s32.totalorder %s34, 0
      %p376 = por %p374, %p375
      %s378 = sadd.s32 %s377, 1
      %p381 = scmp.eq.s32.totalorder %s28, 1
      %p382 = scmp.ne.s32.totalorder %s377, %s379
      %p383 = scmp.eq.s32.totalorder %s28, 0
      %p384 = por %p382, %p383
      %p385 = scmp.ne.s32.totalorder %s377, %s379
      %p386 = scmp.eq.s32.totalorder %s33, 1
      %p387 = por %p385, %p386
      %p388 = scmp.ne.s32.totalorder %s379, %s380
      %p389 = scmp.eq.s32.totalorder %s33, 0
      %p390 = por %p388, %p389
      %p391 = scmp.ne.s32.totalorder %s379, %s380
      %p392 = scmp.eq.s32.totalorder %s34, 1
      %p393 = por %p391, %p392
      %p395 = scmp.ne.s32.totalorder %s380, %s394
      %p396 = scmp.eq.s32.totalorder %s34, 0
      %p397 = por %p395, %p396
      %s399 = sadd.s32 %s398, 1
      %p402 = scmp.eq.s32.totalorder %s28, 1
      %p403 = scmp.ne.s32.totalorder %s398, %s400
      %p404 = scmp.eq.s32.totalorder %s28, 0
      %p405 = por %p403, %p404
      %p406 = scmp.ne.s32.totalorder %s398, %s400
      %p407 = scmp.eq.s32.totalorder %s33, 1
      %p408 = por %p406, %p407
      %p409 = scmp.ne.s32.totalorder %s400, %s401
      %p410 = scmp.eq.s32.totalorder %s33, 0
      %p411 = por %p409, %p410
      %p412 = scmp.ne.s32.totalorder %s400, %s401
      %p413 = scmp.eq.s32.totalorder %s34, 1
      %p414 = por %p412, %p413
      %p416 = scmp.ne.s32.totalorder %s401, %s415
      %p417 = scmp.eq.s32.totalorder %s34, 0
      %p418 = por %p416, %p417
      %s420 = sadd.s32 %s419, 1
      %p423 = scmp.eq.s32.totalorder %s28, 1
      %p424 = scmp.ne.s32.totalorder %s419, %s421
      %p425 = scmp.eq.s32.totalorder %s28, 0
      %p426 = por %p424, %p425
      %p427 = scmp.ne.s32.totalorder %s419, %s421
      %p428 = scmp.eq.s32.totalorder %s33, 1
      %p429 = por %p427, %p428
      %p430 = scmp.ne.s32.totalorder %s421, %s422
      %p431 = scmp.eq.s32.totalorder %s33, 0
      %p432 = por %p430, %p431
      %p433 = scmp.ne.s32.totalorder %s421, %s422
      %p434 = scmp.eq.s32.totalorder %s34, 1
      %p435 = por %p433, %p434
      %p437 = scmp.ne.s32.totalorder %s422, %s436
      %p438 = scmp.eq.s32.totalorder %s34, 0
      %p439 = por %p437, %p438
      %s440 = ssub.s32 %s28, %s35
      %p441 = scmp.eq.s32.totalorder %s440, 0
      %s443 = sadd.s32 %s442, 1
      %s444 = scalar_select %p441, %s442, %s443
      %p447 = pneg %p441
      %p448 = scmp.eq.s32.totalorder %s28, 1
      %p449 = por %p447, %p448
      %p450 = scmp.ne.s32.totalorder %s442, %s445
      %p451 = scmp.eq.s32.totalorder %s28, 0
      %p452 = por %p450, %p451
      %p453 = scmp.ne.s32.totalorder %s442, %s445
      %p454 = scmp.eq.s32.totalorder %s33, 1
      %p455 = por %p453, %p454
      %p456 = scmp.ne.s32.totalorder %s445, %s446
      %p457 = scmp.eq.s32.totalorder %s33, 0
      %p458 = por %p456, %p457
      %p459 = scmp.ne.s32.totalorder %s445, %s446
      %p460 = scmp.eq.s32.totalorder %s34, 1
      %p461 = por %p459, %p460
      %p463 = scmp.ne.s32.totalorder %s446, %s462
      %p464 = scmp.eq.s32.totalorder %s34, 0
      %p465 = por %p463, %p464
      %p466 = scmp.le.s32.totalorder 1, %s28
      %p467 = scmp.lt.s32.totalorder %s28, 3
      %p468 = pnand %p466, %p467
      %p469 = pneg %p468
      // Predicated region
      $region9: #{triad_forward.1} parent=5 // pred_check
        _
      $region10: #{triad_forward.1} parent=5 // pred_check_branch
        %471 = sbr.rel (%p468) target = $region12
      $region11: #{triad_forward.1} parent=5 // pred_region
        %s472 = ssub.s32 %s28, 1
        // Predicated region
        $region13: #{triad_forward.1} parent=11 // pred_check
          %p473 = pneg %p75
        $region14: #{triad_forward.1} parent=11 // pred_check_branch
          %475 = sbr.rel (%p473) target = $region16
        $region15: #{triad_forward.1} parent=11 // pred_region
          _
        $region16: #{triad_forward.1} parent=11 // pred_fallthru
          _
        // Predicated region
        $region17: #{triad_forward.1} parent=11 // pred_check
          %p476 = pneg %p96
        $region18: #{triad_forward.1} parent=11 // pred_check_branch
          %478 = sbr.rel (%p476) target = $region20
        $region19: #{triad_forward.1} parent=11 // pred_region
          _
        $region20: #{triad_forward.1} parent=11 // pred_fallthru
          _
        // Predicated region
        $region21: #{triad_forward.1} parent=11 // pred_check
          %p479 = pneg %p117
        $region22: #{triad_forward.1} parent=11 // pred_check_branch
          %481 = sbr.rel (%p479) target = $region24
        $region23: #{triad_forward.1} parent=11 // pred_region
          _
        $region24: #{triad_forward.1} parent=11 // pred_fallthru
          _
        // Predicated region
        $region25: #{triad_forward.1} parent=11 // pred_check
          %p482 = pneg %p138
        $region26: #{triad_forward.1} parent=11 // pred_check_branch
          %484 = sbr.rel (%p482) target = $region28
        $region27: #{triad_forward.1} parent=11 // pred_region
          _
        $region28: #{triad_forward.1} parent=11 // pred_fallthru
          _
        // Predicated region
        $region29: #{triad_forward.1} parent=11 // pred_check
          %p485 = pneg %p159
        $region30: #{triad_forward.1} parent=11 // pred_check_branch
          %487 = sbr.rel (%p485) target = $region32
        $region31: #{triad_forward.1} parent=11 // pred_region
          _
        $region32: #{triad_forward.1} parent=11 // pred_fallthru
          _
        // Predicated region
        $region33: #{triad_forward.1} parent=11 // pred_check
          %p488 = pneg %p180
        $region34: #{triad_forward.1} parent=11 // pred_check_branch
          %490 = sbr.rel (%p488) target = $region36
        $region35: #{triad_forward.1} parent=11 // pred_region
          _
        $region36: #{triad_forward.1} parent=11 // pred_fallthru
          _
        // Predicated region
        $region37: #{triad_forward.1} parent=11 // pred_check
          %p491 = pneg %p201
        $region38: #{triad_forward.1} parent=11 // pred_check_branch
          %493 = sbr.rel (%p491) target = $region40
        $region39: #{triad_forward.1} parent=11 // pred_region
          _
        $region40: #{triad_forward.1} parent=11 // pred_fallthru
          _
        // Predicated region
        $region41: #{triad_forward.1} parent=11 // pred_check
          %p494 = pneg %p222
        $region42: #{triad_forward.1} parent=11 // pred_check_branch
          %496 = sbr.rel (%p494) target = $region44
        $region43: #{triad_forward.1} parent=11 // pred_region
          _
        $region44: #{triad_forward.1} parent=11 // pred_fallthru
          _
        // Predicated region
        $region45: #{triad_forward.1} parent=11 // pred_check
          %p497 = pneg %p243
        $region46: #{triad_forward.1} parent=11 // pred_check_branch
          %499 = sbr.rel (%p497) target = $region48
        $region47: #{triad_forward.1} parent=11 // pred_region
          _
        $region48: #{triad_forward.1} parent=11 // pred_fallthru
          _
        // Predicated region
        $region49: #{triad_forward.1} parent=11 // pred_check
          %p500 = pneg %p264
        $region50: #{triad_forward.1} parent=11 // pred_check_branch
          %502 = sbr.rel (%p500) target = $region52
        $region51: #{triad_forward.1} parent=11 // pred_region
          _
        $region52: #{triad_forward.1} parent=11 // pred_fallthru
          _
        // Predicated region
        $region53: #{triad_forward.1} parent=11 // pred_check
          %p503 = pneg %p285
        $region54: #{triad_forward.1} parent=11 // pred_check_branch
          %505 = sbr.rel (%p503) target = $region56
        $region55: #{triad_forward.1} parent=11 // pred_region
          _
        $region56: #{triad_forward.1} parent=11 // pred_fallthru
          _
        // Predicated region
        $region57: #{triad_forward.1} parent=11 // pred_check
          %p506 = pneg %p306
        $region58: #{triad_forward.1} parent=11 // pred_check_branch
          %508 = sbr.rel (%p506) target = $region60
        $region59: #{triad_forward.1} parent=11 // pred_region
          _
        $region60: #{triad_forward.1} parent=11 // pred_fallthru
          _
        // Predicated region
        $region61: #{triad_forward.1} parent=11 // pred_check
          %p509 = pneg %p327
        $region62: #{triad_forward.1} parent=11 // pred_check_branch
          %511 = sbr.rel (%p509) target = $region64
        $region63: #{triad_forward.1} parent=11 // pred_region
          _
        $region64: #{triad_forward.1} parent=11 // pred_fallthru
          _
        // Predicated region
        $region65: #{triad_forward.1} parent=11 // pred_check
          %p512 = pneg %p348
        $region66: #{triad_forward.1} parent=11 // pred_check_branch
          %514 = sbr.rel (%p512) target = $region68
        $region67: #{triad_forward.1} parent=11 // pred_region
          _
        $region68: #{triad_forward.1} parent=11 // pred_fallthru
          _
        // Predicated region
        $region69: #{triad_forward.1} parent=11 // pred_check
          %p515 = pneg %p369
        $region70: #{triad_forward.1} parent=11 // pred_check_branch
          %517 = sbr.rel (%p515) target = $region72
        $region71: #{triad_forward.1} parent=11 // pred_region
          _
        $region72: #{triad_forward.1} parent=11 // pred_fallthru
          _
        // Predicated region
        $region73: #{triad_forward.1} parent=11 // pred_check
          %p518 = pneg %p390
        $region74: #{triad_forward.1} parent=11 // pred_check_branch
          %520 = sbr.rel (%p518) target = $region76
        $region75: #{triad_forward.1} parent=11 // pred_region
          _
        $region76: #{triad_forward.1} parent=11 // pred_fallthru
          _
        // Predicated region
        $region77: #{triad_forward.1} parent=11 // pred_check
          %p521 = pneg %p411
        $region78: #{triad_forward.1} parent=11 // pred_check_branch
          %523 = sbr.rel (%p521) target = $region80
        $region79: #{triad_forward.1} parent=11 // pred_region
          _
        $region80: #{triad_forward.1} parent=11 // pred_fallthru
          _
        // Predicated region
        $region81: #{triad_forward.1} parent=11 // pred_check
          %p524 = pneg %p432
        $region82: #{triad_forward.1} parent=11 // pred_check_branch
          %526 = sbr.rel (%p524) target = $region84
        $region83: #{triad_forward.1} parent=11 // pred_region
          _
        $region84: #{triad_forward.1} parent=11 // pred_fallthru
          _
      $region12: #{triad_forward.1} parent=5 // pred_fallthru
        _
      %p527 = scmp.lt.s32.totalorder %s28, 2
      // Predicated region
      $region85: #{triad_forward.1} parent=5 // pred_check
        %p528 = pneg %p527
      $region86: #{triad_forward.1} parent=5 // pred_check_branch
        %530 = sbr.rel (%p528) target = $region88
      $region87: #{triad_forward.1} parent=5 // pred_region
        // Predicated region
        $region89: #{triad_forward.1} parent=87 // pred_check
          %p531 = pneg %p48
        $region90: #{triad_forward.1} parent=87 // pred_check_branch
          %533 = sbr.rel (%p531) target = $region92
        $region91: #{triad_forward.1} parent=87 // pred_region
          %p534 = scmp.lt.s32.totalorder %s28, 1
          %s535 = scalar_select %p534, %s28, 1
          %s536 = smul.addr %s535, 4
          %s537 = smul.addr %s536, 8
          %s538 = scalar_lea.vmem %s0, %s537
        $region92: #{triad_forward.1} parent=87 // pred_fallthru
          _
      $region88: #{triad_forward.1} parent=5 // pred_fallthru
        _
      %p539 = scmp.le.s32.totalorder 1, %s28
      %p540 = scmp.lt.s32.totalorder %s28, 3
      %p541 = pnand %p539, %p540
      %p542 = pneg %p541
      // Predicated region
      $region93: #{triad_forward.1} parent=5 // pred_check
        _
      $region94: #{triad_forward.1} parent=5 // pred_check_branch
        %544 = sbr.rel (%p541) target = $region96
      $region95: #{triad_forward.1} parent=5 // pred_region
        %s545 = ssub.s32 %s28, 1
        %p546 = scmp.lt.s32.totalorder %s33, 1
        %s547 = scalar_select %p546, %s33, 1
        %s548 = smul.addr %s547, 4
        %s549 = smul.addr %s548, 8
        %s550 = scalar_lea.vmem %s0, %s549
        %p551 = pneg %p54
        %p552 = pneg %p51
        %p553 = pneg %p75
        %p554 = pneg %p72
        %p555 = pneg %p96
        %p556 = pneg %p93
        %p557 = pneg %p117
        %p558 = pneg %p114
        %p559 = pneg %p138
        %p560 = pneg %p135
        %p561 = pneg %p159
        %p562 = pneg %p156
        %p563 = pneg %p180
        %p564 = pneg %p177
        %p565 = pneg %p201
        %p566 = pneg %p198
        %p567 = pneg %p222
        %p568 = pneg %p219
        %p569 = pneg %p243
        %p570 = pneg %p240
        %p571 = pneg %p264
        %p572 = pneg %p261
        %p573 = pneg %p285
        %p574 = pneg %p282
        %p575 = pneg %p306
        %p576 = pneg %p303
        %p577 = pneg %p327
        %p578 = pneg %p324
        %p579 = pneg %p348
        %p580 = pneg %p345
        %p581 = pneg %p369
        %p582 = pneg %p366
        %p583 = pneg %p390
        %p584 = pneg %p387
        %p585 = pneg %p411
        %p586 = pneg %p408
        %p587 = pneg %p432
        %p588 = pneg %p429
        %p589 = pneg %p458
        %p590 = pneg %p455
        %s591 = sand.u32 %s445, 1
        %s592 = scalar_lea.sflag [#allocation3], %s591
        %s593 = sand.u32 %s445, 1
        %s594 = smul.addr %s593, 4
        %s595 = scalar_lea.vmem [#allocation2], %s594
        %p596 = scmp.lt.s32.totalorder %s33, 1
        %s597 = scalar_select %p596, %s33, 1
        %s598 = smul.addr %s597, 4
        %s599 = smul.addr %s598, 8
        %s600 = scalar_lea.vmem %s0, %s599
        %v601 = vld [vmem:[%s600] sm:$0xff]
        %v602 = vld [vmem:[%s600 + $0x8] sm:$0xff]
        %v603 = vld [vmem:[%s600 + $0x10] sm:$0xff]
        %v604 = vld [vmem:[%s600 + $0x18] sm:$0xff]
        %v605 = vlaneseq
        %v606 = vshrl.u32 %v605, 7
        %v607 = vadd.s32 %v606, 8
        %v608 = vadd.s32 %v606, 16
        %v609 = vadd.s32 %v606, 24
        %v610 = vand.u32 %v606, 7
        %v611 = vand.u32 %v607, 7
        %v612 = vand.u32 %v608, 7
        %v613 = vand.u32 %v609, 7
        %v614 = vld [vmem:[%s1] sm:$0x7]
        %v615 = vld [vmem:[%s2] sm:$0x1]
        %v616 = vrot.slane %v601, 7
        %v617 = vrot.slane %v602, 7
        %v618 = vrot.slane %v603, 7
        %v619 = vrot.slane %v604, 7
        %vm620 = vcmp.lt.s32.totalorder %v606, 1
        %v621 = vsel %vm620, %v618, %v619
        %v622 = vsel %vm620, %v617, %v618
        %v623 = vsel %vm620, %v616, %v617
        %v624 = vsel %vm620, %v619, %v616
        %vm625 = vcmp.ge.s32.totalorder %v610, 1
        %vm626 = vcmp.ge.s32.totalorder %v611, 1
        %vm627 = vcmp.ge.s32.totalorder %v612, 1
        %vm628 = vcmp.ge.s32.totalorder %v613, 1
        %v629 = vsel %vm625, %v624, 0.0
        %v630 = vsel %vm626, %v623, 0.0
        %v631 = vsel %vm627, %v622, 0.0
        %v632 = vsel %vm628, %v621, 0.0
        %v633 = vrot.slane %v601, 1
        %v634 = vrot.slane %v602, 1
        %v635 = vrot.slane %v603, 1
        %v636 = vrot.slane %v604, 1
        %vm637 = vcmp.lt.s32.totalorder %v606, 7
        %v638 = vsel %vm637, %v635, %v636
        %v639 = vsel %vm637, %v634, %v635
        %v640 = vsel %vm637, %v633, %v634
        %v641 = vsel %vm637, %v636, %v633
        %vm642 = vcmp.lt.s32.totalorder %v610, 7
        %vm643 = vcmp.lt.s32.totalorder %v611, 7
        %vm644 = vcmp.lt.s32.totalorder %v612, 7
        %vm645 = vcmp.lt.s32.totalorder %v613, 7
        %v646 = vsel %vm642, %v640, 0.0
        %v647 = vsel %vm643, %v639, 0.0
        %v648 = vsel %vm644, %v638, 0.0
        %v649 = vsel %vm645, %v641, 0.0
        %v650 = vlaneseq
        %v651 = vshrl.u32 %v650, 7
        %v652 = vsub.s32 0, %v651
        %v653 = vrot.slane %v614, %v652
        %v654 = vmul.f32 %v629, %v653
        %v655 = vmul.f32 %v630, %v653
        %v656 = vmul.f32 %v631, %v653
        %v657 = vmul.f32 %v632, %v653
        %v658 = vlaneseq
        %v659 = vshrl.u32 %v658, 7
        %v660 = vsub.s32 1, %v659
        %v661 = vrot.slane %v614, %v660
        %v662 = vmul.f32 %v601, %v661
        %v663 = vmul.f32 %v602, %v661
        %v664 = vmul.f32 %v603, %v661
        %v665 = vmul.f32 %v604, %v661
        %v666 = vadd.f32 %v654, %v662
        %v667 = vadd.f32 %v655, %v663
        %v668 = vadd.f32 %v656, %v664
        %v669 = vadd.f32 %v657, %v665
        %v670 = vlaneseq
        %v671 = vshrl.u32 %v670, 7
        %v672 = vsub.s32 2, %v671
        %v673 = vrot.slane %v614, %v672
        %v674 = vmul.f32 %v646, %v673
        %v675 = vmul.f32 %v647, %v673
        %v676 = vmul.f32 %v648, %v673
        %v677 = vmul.f32 %v649, %v673
        %v678 = vadd.f32 %v666, %v674
        %v679 = vadd.f32 %v667, %v675
        %v680 = vadd.f32 %v668, %v676
        %v681 = vadd.f32 %v669, %v677
        %v683 = vlaneseq
        %v684 = vshrl.u32 %v683, 7
        %v685 = vsub.s32 0, %v684
        %v686 = vrot.slane %v615, %v685
        %v688 = vadd.f32 %v678, %v686
        %v689 = vadd.f32 %v679, %v686
        %v690 = vadd.f32 %v680, %v686
        %v691 = vadd.f32 %v681, %v686
        %v692 = vmul.f32 %v688, 0.5
        %v693 = vmul.f32 %v689, 0.5
        %v694 = vmul.f32 %v690, 0.5
        %v695 = vmul.f32 %v691, 0.5
        %v696 = vmul.f32 %v688, %v688
        %v697 = vmul.f32 %v689, %v689
        %v698 = vmul.f32 %v690, %v690
        %v699 = vmul.f32 %v691, %v691
        %v700 = vmul.f32 %v696, %v688
        %v701 = vmul.f32 %v697, %v689
        %v702 = vmul.f32 %v698, %v690
        %v703 = vmul.f32 %v699, %v691
        %v704 = vmul.f32 %v700, 0.044715
        %v705 = vmul.f32 %v701, 0.044715
        %v706 = vmul.f32 %v702, 0.044715
        %v707 = vmul.f32 %v703, 0.044715
        %v708 = vadd.f32 %v688, %v704
        %v709 = vadd.f32 %v689, %v705
        %v710 = vadd.f32 %v690, %v706
        %v711 = vadd.f32 %v691, %v707
        %v712 = vmul.f32 %v708, 0.7978846
        %v713 = vmul.f32 %v709, 0.7978846
        %v714 = vmul.f32 %v710, 0.7978846
        %v715 = vmul.f32 %v711, 0.7978846
        %v716 = vtanh.pop %v712
        %v717 = vtanh.pop %v713
        %v718 = vtanh.pop %v714
        %v719 = vtanh.pop %v715
        %v720 = vadd.f32 %v716, 1.0
        %v721 = vadd.f32 %v717, 1.0
        %v722 = vadd.f32 %v718, 1.0
        %v723 = vadd.f32 %v719, 1.0
        %v724 = vmul.f32 %v692, %v720
        %v725 = vmul.f32 %v693, %v721
        %v726 = vmul.f32 %v694, %v722
        %v727 = vmul.f32 %v695, %v723
        %v728 = vld [vmem:[%s3] sm:$0xff]
        %v729 = vld [vmem:[%s3 + $0x8] sm:$0xff]
        %v730 = vld [vmem:[%s3 + $0x10] sm:$0xff]
        %v731 = vld [vmem:[%s3 + $0x18] sm:$0xff]
        %v732 = vld [vmem:[%s4] sm:$0x1]
        %v734 = vlaneseq
        %v735 = vshrl.u32 %v734, 7
        %v736 = vsub.s32 0, %v735
        %v737 = vrot.slane %v732, %v736
        %vm739 = vcmask 261120
        %v741 = vsel %vm739, %v724, 0
        %v744 = vsel %vm739, %v725, 0
        %v747 = vsel %vm739, %v726, 0
        %v750 = vsel %vm739, %v727, 0
        %752 = vmatprep.subr.mxu0 0.0
        %753 = vmatpush1.msra.mxu0 %v728
        %754 = vmatprep.subr.mxu0 0.0
        %755 = vmatpush1.msra.mxu0 %v729
        %756 = vmatprep.subr.mxu0 0.0
        %757 = vmatpush1.msra.mxu0 %v730
        %758 = vmatprep.subr.mxu0 0.0
        %759 = vmatpush1.msra.mxu0 %v731
        %760 = vmatprep.subr.mxu0 0.0
        %761 = vmatpush1.msra.mxu0 0.0
        %762 = vmatprep.subr.mxu0 0.0
        %763 = vmatpush1.msra.mxu0 0.0
        %764 = vmatprep.subr.mxu0 0.0
        %765 = vmatpush1.msra.mxu0 0.0
        %766 = vmatprep.subr.mxu0 0.0
        %767 = vmatpush1.msra.mxu0 0.0
        %768 = vmatprep.subr.mxu0 0.0
        %769 = vmatpush1.msra.mxu0 0.0
        %770 = vmatprep.subr.mxu0 0.0
        %771 = vmatpush1.msra.mxu0 0.0
        %772 = vmatprep.subr.mxu0 0.0
        %773 = vmatpush1.msra.mxu0 0.0
        %774 = vmatprep.subr.mxu0 0.0
        %775 = vmatpush1.msra.mxu0 0.0
        %776 = vmatprep.subr.mxu0 0.0
        %777 = vmatpush1.msra.mxu0 0.0
        %778 = vmatprep.subr.mxu0 0.0
        %779 = vmatpush1.msra.mxu0 0.0
        %780 = vmatprep.subr.mxu0 0.0
        %781 = vmatpush1.msra.mxu0 0.0
        %782 = vmatprep.subr.mxu0 0.0
        %783 = vmatpush1.msra.mxu0 0.0
        %784 = vmatprep.subr.mxu0 0.0
        %785 = vmatpush1.msra.mxu0 0.0
        %786 = vmatprep.subr.mxu0 0.0
        %787 = vmatpush1.msra.mxu0 0.0
        %788 = vmatprep.subr.mxu0 0.0
        %789 = vmatpush1.msra.mxu0 0.0
        %790 = vmatprep.subr.mxu0 0.0
        %791 = vmatpush1.msra.mxu0 0.0
        %792 = vmatprep.subr.mxu0 0.0
        %793 = vmatpush1.msra.mxu0 0.0
        %794 = vmatprep.subr.mxu0 0.0
        %795 = vmatpush1.msra.mxu0 0.0
        %796 = vmatprep.subr.mxu0 0.0
        %797 = vmatpush1.msra.mxu0 0.0
        %798 = vmatprep.subr.mxu0 0.0
        %799 = vmatpush1.msra.mxu0 0.0
        %800 = vmatprep.subr.mxu0 0.0
        %801 = vmatpush1.msra.mxu0 0.0
        %802 = vmatprep.subr.mxu0 0.0
        %803 = vmatpush1.msra.mxu0 0.0
        %804 = vmatprep.subr.mxu0 0.0
        %805 = vmatpush1.msra.mxu0 0.0
        %806 = vmatprep.subr.mxu0 0.0
        %807 = vmatpush1.msra.mxu0 0.0
        %808 = vmatprep.subr.mxu0 0.0
        %809 = vmatpush1.msra.mxu0 0.0
        %810 = vmatprep.subr.mxu0 0.0
        %811 = vmatpush1.msra.mxu0 0.0
        %812 = vmatprep.subr.mxu0 0.0
        %813 = vmatpush1.msra.mxu0 0.0
        %814 = vmatprep.subr.mxu0 0.0
        %815 = vmatpush1.msra.mxu0 0.0
        %816 = vmatprep.mubr.f32.mxu0 0.0
        %817 = vmatmul.mubr.f32.gmra.mrb[0].mxu0 %v741
        %v818 = vpop.f32.mrb[0].mxu0
        %v819 = vadd.f32 %v737, %v818
        %v820 = vpop.f32.mrb[0].mxu0
        %821 = vmatprep.mubr.f32.mxu0 0.0
        %822 = vmatmul.mubr.f32.gmra.mrb[0].mxu0 %v744
        %v823 = vpop.f32.mrb[0].mxu0
        %v824 = vadd.f32 %v737, %v823
        %v825 = vpop.f32.mrb[0].mxu0
        %826 = vmatprep.mubr.f32.mxu0 0.0
        %827 = vmatmul.mubr.f32.gmra.mrb[0].mxu0 %v747
        %v828 = vpop.f32.mrb[0].mxu0
        %v829 = vadd.f32 %v737, %v828
        %v830 = vpop.f32.mrb[0].mxu0
        %831 = vmatprep.mubr.f32.mxu0 0.0
        %832 = vmatmul.mubr.f32.gmra.mrb[0].mxu0 %v750
        %v833 = vpop.f32.mrb[0].mxu0
        %v834 = vadd.f32 %v737, %v833
        %v835 = vpop.f32.mrb[0].mxu0
        %836 = vdwg.mxu0
        %v837 = vmul.f32 %v819, 0.5
        %v838 = vmul.f32 %v824, 0.5
        %v839 = vmul.f32 %v829, 0.5
        %v840 = vmul.f32 %v834, 0.5
        %v841 = vmul.f32 %v819, %v819
        %v842 = vmul.f32 %v824, %v824
        %v843 = vmul.f32 %v829, %v829
        %v844 = vmul.f32 %v834, %v834
        %v845 = vmul.f32 %v841, %v819
        %v846 = vmul.f32 %v842, %v824
        %v847 = vmul.f32 %v843, %v829
        %v848 = vmul.f32 %v844, %v834
        %v849 = vmul.f32 %v845, 0.044715
        %v850 = vmul.f32 %v846, 0.044715
        %v851 = vmul.f32 %v847, 0.044715
        %v852 = vmul.f32 %v848, 0.044715
        %v853 = vadd.f32 %v819, %v849
        %v854 = vadd.f32 %v824, %v850
        %v855 = vadd.f32 %v829, %v851
        %v856 = vadd.f32 %v834, %v852
        %v857 = vmul.f32 %v853, 0.7978846
        %v858 = vmul.f32 %v854, 0.7978846
        %v859 = vmul.f32 %v855, 0.7978846
        %v860 = vmul.f32 %v856, 0.7978846
        %v861 = vtanh.pop %v857
        %v862 = vtanh.pop %v858
        %v863 = vtanh.pop %v859
        %v864 = vtanh.pop %v860
        %v865 = vadd.f32 %v861, 1.0
        %v866 = vadd.f32 %v862, 1.0
        %v867 = vadd.f32 %v863, 1.0
        %v868 = vadd.f32 %v864, 1.0
        %v869 = vmul.f32 %v837, %v865
        %v870 = vmul.f32 %v838, %v866
        %v871 = vmul.f32 %v839, %v867
        %v872 = vmul.f32 %v840, %v868
        %s873 = scalar_lea.vmem %s1, 4
        %v874 = vld [vmem:[%s873] sm:$0x7]
        %s875 = scalar_lea.vmem %s2, 1
        %v876 = vld [vmem:[%s875] sm:$0x1]
        %v877 = vrot.slane %v869, 6
        %v878 = vrot.slane %v870, 6
        %v879 = vrot.slane %v871, 6
        %v880 = vrot.slane %v872, 6
        %vm881 = vcmp.lt.s32.totalorder %v606, 2
        %v882 = vsel %vm881, %v879, %v880
        %v883 = vsel %vm881, %v878, %v879
        %v884 = vsel %vm881, %v877, %v878
        %v885 = vsel %vm881, %v880, %v877
        %vm886 = vcmp.ge.s32.totalorder %v610, 2
        %vm887 = vcmp.ge.s32.totalorder %v611, 2
        %vm888 = vcmp.ge.s32.totalorder %v612, 2
        %vm889 = vcmp.ge.s32.totalorder %v613, 2
        %v890 = vsel %vm886, %v885, 0.0
        %v891 = vsel %vm887, %v884, 0.0
        %v892 = vsel %vm888, %v883, 0.0
        %v893 = vsel %vm889, %v882, 0.0
        %v894 = vrot.slane %v869, 2
        %v895 = vrot.slane %v870, 2
        %v896 = vrot.slane %v871, 2
        %v897 = vrot.slane %v872, 2
        %vm898 = vcmp.lt.s32.totalorder %v606, 6
        %v899 = vsel %vm898, %v896, %v897
        %v900 = vsel %vm898, %v895, %v896
        %v901 = vsel %vm898, %v894, %v895
        %v902 = vsel %vm898, %v897, %v894
        %vm903 = vcmp.lt.s32.totalorder %v610, 6
        %vm904 = vcmp.lt.s32.totalorder %v611, 6
        %vm905 = vcmp.lt.s32.totalorder %v612, 6
        %vm906 = vcmp.lt.s32.totalorder %v613, 6
        %v907 = vsel %vm903, %v901, 0.0
        %v908 = vsel %vm904, %v900, 0.0
        %v909 = vsel %vm905, %v899, 0.0
        %v910 = vsel %vm906, %v902, 0.0
        %v911 = vlaneseq
        %v912 = vshrl.u32 %v911, 7
        %v913 = vsub.s32 0, %v912
        %v914 = vrot.slane %v874, %v913
        %v915 = vmul.f32 %v890, %v914
        %v916 = vmul.f32 %v891, %v914
        %v917 = vmul.f32 %v892, %v914
        %v918 = vmul.f32 %v893, %v914
        %v919 = vlaneseq
        %v920 = vshrl.u32 %v919, 7
        %v921 = vsub.s32 1, %v920
        %v922 = vrot.slane %v874, %v921
        %v923 = vmul.f32 %v869, %v922
        %v924 = vmul.f32 %v870, %v922
        %v925 = vmul.f32 %v871, %v922
        %v926 = vmul.f32 %v872, %v922
        %v927 = vadd.f32 %v915, %v923
        %v928 = vadd.f32 %v916, %v924
        %v929 = vadd.f32 %v917, %v925
        %v930 = vadd.f32 %v918, %v926
        %v931 = vlaneseq
        %v932 = vshrl.u32 %v931, 7
        %v933 = vsub.s32 2, %v932
        %v934 = vrot.slane %v874, %v933
        %v935 = vmul.f32 %v907, %v934
        %v936 = vmul.f32 %v908, %v934
        %v937 = vmul.f32 %v909, %v934
        %v938 = vmul.f32 %v910, %v934
        %v939 = vadd.f32 %v927, %v935
        %v940 = vadd.f32 %v928, %v936
        %v941 = vadd.f32 %v929, %v937
        %v942 = vadd.f32 %v930, %v938
        %v944 = vlaneseq
        %v945 = vshrl.u32 %v944, 7
        %v946 = vsub.s32 0, %v945
        %v947 = vrot.slane %v876, %v946
        %v949 = vadd.f32 %v939, %v947
        %v950 = vadd.f32 %v940, %v947
        %v951 = vadd.f32 %v941, %v947
        %v952 = vadd.f32 %v942, %v947
        %v953 = vmul.f32 %v949, 0.5
        %v954 = vmul.f32 %v950, 0.5
        %v955 = vmul.f32 %v951, 0.5
        %v956 = vmul.f32 %v952, 0.5
        %v957 = vmul.f32 %v949, %v949
        %v958 = vmul.f32 %v950, %v950
        %v959 = vmul.f32 %v951, %v951
        %v960 = vmul.f32 %v952, %v952
        %v961 = vmul.f32 %v957, %v949
        %v962 = vmul.f32 %v958, %v950
        %v963 = vmul.f32 %v959, %v951
        %v964 = vmul.f32 %v960, %v952
        %v965 = vmul.f32 %v961, 0.044715
        %v966 = vmul.f32 %v962, 0.044715
        %v967 = vmul.f32 %v963, 0.044715
        %v968 = vmul.f32 %v964, 0.044715
        %v969 = vadd.f32 %v949, %v965
        %v970 = vadd.f32 %v950, %v966
        %v971 = vadd.f32 %v951, %v967
        %v972 = vadd.f32 %v952, %v968
        %v973 = vmul.f32 %v969, 0.7978846
        %v974 = vmul.f32 %v970, 0.7978846
        %v975 = vmul.f32 %v971, 0.7978846
        %v976 = vmul.f32 %v972, 0.7978846
        %v977 = vtanh.pop %v973
        %v978 = vtanh.pop %v974
        %v979 = vtanh.pop %v975
        %v980 = vtanh.pop %v976
        %v981 = vadd.f32 %v977, 1.0
        %v982 = vadd.f32 %v978, 1.0
        %v983 = vadd.f32 %v979, 1.0
        %v984 = vadd.f32 %v980, 1.0
        %v985 = vmul.f32 %v953, %v981
        %v986 = vmul.f32 %v954, %v982
        %v987 = vmul.f32 %v955, %v983
        %v988 = vmul.f32 %v956, %v984
        %s989 = scalar_lea.vmem %s3, 32
        %v990 = vld [vmem:[%s989] sm:$0xff]
        %v991 = vld [vmem:[%s989 + $0x8] sm:$0xff]
        %v992 = vld [vmem:[%s989 + $0x10] sm:$0xff]
        %v993 = vld [vmem:[%s989 + $0x18] sm:$0xff]
        %s994 = scalar_lea.vmem %s4, 1
        %v995 = vld [vmem:[%s994] sm:$0x1]
        %v997 = vlaneseq
        %v998 = vshrl.u32 %v997, 7
        %v999 = vsub.s32 0, %v998
        %v1000 = vrot.slane %v995, %v999
        %v1003 = vsel %vm739, %v985, 0
        %v1006 = vsel %vm739, %v986, 0
        %v1009 = vsel %vm739, %v987, 0
        %v1012 = vsel %vm739, %v988, 0
        %1014 = vmatprep.subr.mxu0 0.0
        %1015 = vmatpush1.msra.mxu0 %v990
        %1016 = vmatprep.subr.mxu0 0.0
        %1017 = vmatpush1.msra.mxu0 %v991
        %1018 = vmatprep.subr.mxu0 0.0
        %1019 = vmatpush1.msra.mxu0 %v992
        %1020 = vmatprep.subr.mxu0 0.0
        %1021 = vmatpush1.msra.mxu0 %v993
        %1022 = vmatprep.subr.mxu0 0.0
        %1023 = vmatpush1.msra.mxu0 0.0
        %1024 = vmatprep.subr.mxu0 0.0
        %1025 = vmatpush1.msra.mxu0 0.0
        %1026 = vmatprep.subr.mxu0 0.0
        %1027 = vmatpush1.msra.mxu0 0.0
        %1028 = vmatprep.subr.mxu0 0.0
        %1029 = vmatpush1.msra.mxu0 0.0
        %1030 = vmatprep.subr.mxu0 0.0
        %1031 = vmatpush1.msra.mxu0 0.0
        %1032 = vmatprep.subr.mxu0 0.0
        %1033 = vmatpush1.msra.mxu0 0.0
        %1034 = vmatprep.subr.mxu0 0.0
        %1035 = vmatpush1.msra.mxu0 0.0
        %1036 = vmatprep.subr.mxu0 0.0
        %1037 = vmatpush1.msra.mxu0 0.0
        %1038 = vmatprep.subr.mxu0 0.0
        %1039 = vmatpush1.msra.mxu0 0.0
        %1040 = vmatprep.subr.mxu0 0.0
        %1041 = vmatpush1.msra.mxu0 0.0
        %1042 = vmatprep.subr.mxu0 0.0
        %1043 = vmatpush1.msra.mxu0 0.0
        %1044 = vmatprep.subr.mxu0 0.0
        %1045 = vmatpush1.msra.mxu0 0.0
        %1046 = vmatprep.subr.mxu0 0.0
        %1047 = vmatpush1.msra.mxu0 0.0
        %1048 = vmatprep.subr.mxu0 0.0
        %1049 = vmatpush1.msra.mxu0 0.0
        %1050 = vmatprep.subr.mxu0 0.0
        %1051 = vmatpush1.msra.mxu0 0.0
        %1052 = vmatprep.subr.mxu0 0.0
        %1053 = vmatpush1.msra.mxu0 0.0
        %1054 = vmatprep.subr.mxu0 0.0
        %1055 = vmatpush1.msra.mxu0 0.0
        %1056 = vmatprep.subr.mxu0 0.0
        %1057 = vmatpush1.msra.mxu0 0.0
        %1058 = vmatprep.subr.mxu0 0.0
        %1059 = vmatpush1.msra.mxu0 0.0
        %1060 = vmatprep.subr.mxu0 0.0
        %1061 = vmatpush1.msra.mxu0 0.0
        %1062 = vmatprep.subr.mxu0 0.0
        %1063 = vmatpush1.msra.mxu0 0.0
        %1064 = vmatprep.subr.mxu0 0.0
        %1065 = vmatpush1.msra.mxu0 0.0
        %1066 = vmatprep.subr.mxu0 0.0
        %1067 = vmatpush1.msra.mxu0 0.0
        %1068 = vmatprep.subr.mxu0 0.0
        %1069 = vmatpush1.msra.mxu0 0.0
        %1070 = vmatprep.subr.mxu0 0.0
        %1071 = vmatpush1.msra.mxu0 0.0
        %1072 = vmatprep.subr.mxu0 0.0
        %1073 = vmatpush1.msra.mxu0 0.0
        %1074 = vmatprep.subr.mxu0 0.0
        %1075 = vmatpush1.msra.mxu0 0.0
        %1076 = vmatprep.subr.mxu0 0.0
        %1077 = vmatpush1.msra.mxu0 0.0
        %1078 = vmatprep.mubr.f32.mxu0 0.0
        %1079 = vmatmul.mubr.f32.gmra.mrb[0].mxu0 %v1003
        %v1080 = vpop.f32.mrb[0].mxu0
        %v1081 = vadd.f32 %v1000, %v1080
        %v1082 = vpop.f32.mrb[0].mxu0
        %1083 = vmatprep.mubr.f32.mxu0 0.0
        %1084 = vmatmul.mubr.f32.gmra.mrb[0].mxu0 %v1006
        %v1085 = vpop.f32.mrb[0].mxu0
        %v1086 = vadd.f32 %v1000, %v1085
        %v1087 = vpop.f32.mrb[0].mxu0
        %1088 = vmatprep.mubr.f32.mxu0 0.0
        %1089 = vmatmul.mubr.f32.gmra.mrb[0].mxu0 %v1009
        %v1090 = vpop.f32.mrb[0].mxu0
        %v1091 = vadd.f32 %v1000, %v1090
        %v1092 = vpop.f32.mrb[0].mxu0
        %1093 = vmatprep.mubr.f32.mxu0 0.0
        %1094 = vmatmul.mubr.f32.gmra.mrb[0].mxu0 %v1012
        %v1095 = vpop.f32.mrb[0].mxu0
        %v1096 = vadd.f32 %v1000, %v1095
        %v1097 = vpop.f32.mrb[0].mxu0
        %1098 = vdwg.mxu0
        %v1099 = vmul.f32 %v1081, 0.5
        %v1100 = vmul.f32 %v1086, 0.5
        %v1101 = vmul.f32 %v1091, 0.5
        %v1102 = vmul.f32 %v1096, 0.5
        %v1103 = vmul.f32 %v1081, %v1081
        %v1104 = vmul.f32 %v1086, %v1086
        %v1105 = vmul.f32 %v1091, %v1091
        %v1106 = vmul.f32 %v1096, %v1096
        %v1107 = vmul.f32 %v1103, %v1081
        %v1108 = vmul.f32 %v1104, %v1086
        %v1109 = vmul.f32 %v1105, %v1091
        %v1110 = vmul.f32 %v1106, %v1096
        %v1111 = vmul.f32 %v1107, 0.044715
        %v1112 = vmul.f32 %v1108, 0.044715
        %v1113 = vmul.f32 %v1109, 0.044715
        %v1114 = vmul.f32 %v1110, 0.044715
        %v1115 = vadd.f32 %v1081, %v1111
        %v1116 = vadd.f32 %v1086, %v1112
        %v1117 = vadd.f32 %v1091, %v1113
        %v1118 = vadd.f32 %v1096, %v1114
        %v1119 = vmul.f32 %v1115, 0.7978846
        %v1120 = vmul.f32 %v1116, 0.7978846
        %v1121 = vmul.f32 %v1117, 0.7978846
        %v1122 = vmul.f32 %v1118, 0.7978846
        %v1123 = vtanh.pop %v1119
        %v1124 = vtanh.pop %v1120
        %v1125 = vtanh.pop %v1121
        %v1126 = vtanh.pop %v1122
        %v1127 = vadd.f32 %v1123, 1.0
        %v1128 = vadd.f32 %v1124, 1.0
        %v1129 = vadd.f32 %v1125, 1.0
        %v1130 = vadd.f32 %v1126, 1.0
        %v1131 = vmul.f32 %v1099, %v1127
        %v1132 = vmul.f32 %v1100, %v1128
        %v1133 = vmul.f32 %v1101, %v1129
        %v1134 = vmul.f32 %v1102, %v1130
        %v1135 = vlaneseq
        %v1136 = vand.u32 %v1135, 127
        %v1137 = vmul.u32 %v606, 8
        %vm1138 = vcmp.ge.s32.totalorder %v1136, %v1137
        %v1139 = vadd.s32 %v606, 1
        %v1140 = vmul.u32 %v1139, 8
        %vm1141 = vcmp.lt.s32.totalorder %v1136, %v1140
        %vm1142 = vmand %vm1138, %vm1141
        %v1143 = vsel %vm1142, 0.125, 0.0
        %v1145 = vsel %vm739, %v1143, 0
        %1147 = vmatprep.subr.mxu0 0.0
        %1148 = vmatpush1.msra.mxu0 %v869
        %1149 = vmatprep.subr.mxu0 0.0
        %1150 = vmatpush1.msra.mxu0 %v870
        %1151 = vmatprep.subr.mxu0 0.0
        %1152 = vmatpush1.msra.mxu0 %v871
        %1153 = vmatprep.subr.mxu0 0.0
        %1154 = vmatpush1.msra.mxu0 %v872
        %1155 = vmatprep.subr.mxu0 0.0
        %1156 = vmatpush1.msra.mxu0 0.0
        %1157 = vmatprep.subr.mxu0 0.0
        %1158 = vmatpush1.msra.mxu0 0.0
        %1159 = vmatprep.subr.mxu0 0.0
        %1160 = vmatpush1.msra.mxu0 0.0
        %1161 = vmatprep.subr.mxu0 0.0
        %1162 = vmatpush1.msra.mxu0 0.0
        %1163 = vmatprep.subr.mxu0 0.0
        %1164 = vmatpush1.msra.mxu0 0.0
        %1165 = vmatprep.subr.mxu0 0.0
        %1166 = vmatpush1.msra.mxu0 0.0
        %1167 = vmatprep.subr.mxu0 0.0
        %1168 = vmatpush1.msra.mxu0 0.0
        %1169 = vmatprep.subr.mxu0 0.0
        %1170 = vmatpush1.msra.mxu0 0.0
        %1171 = vmatprep.subr.mxu0 0.0
        %1172 = vmatpush1.msra.mxu0 0.0
        %1173 = vmatprep.subr.mxu0 0.0
        %1174 = vmatpush1.msra.mxu0 0.0
        %1175 = vmatprep.subr.mxu0 0.0
        %1176 = vmatpush1.msra.mxu0 0.0
        %1177 = vmatprep.subr.mxu0 0.0
        %1178 = vmatpush1.msra.mxu0 0.0
        %1179 = vmatprep.subr.mxu0 0.0
        %1180 = vmatpush1.msra.mxu0 0.0
        %1181 = vmatprep.subr.mxu0 0.0
        %1182 = vmatpush1.msra.mxu0 0.0
        %1183 = vmatprep.subr.mxu0 0.0
        %1184 = vmatpush1.msra.mxu0 0.0
        %1185 = vmatprep.subr.mxu0 0.0
        %1186 = vmatpush1.msra.mxu0 0.0
        %1187 = vmatprep.subr.mxu0 0.0
        %1188 = vmatpush1.msra.mxu0 0.0
        %1189 = vmatprep.subr.mxu0 0.0
        %1190 = vmatpush1.msra.mxu0 0.0
        %1191 = vmatprep.subr.mxu0 0.0
        %1192 = vmatpush1.msra.mxu0 0.0
        %1193 = vmatprep.subr.mxu0 0.0
        %1194 = vmatpush1.msra.mxu0 0.0
        %1195 = vmatprep.subr.mxu0 0.0
        %1196 = vmatpush1.msra.mxu0 0.0
        %1197 = vmatprep.subr.mxu0 0.0
        %1198 = vmatpush1.msra.mxu0 0.0
        %1199 = vmatprep.subr.mxu0 0.0
        %1200 = vmatpush1.msra.mxu0 0.0
        %1201 = vmatprep.subr.mxu0 0.0
        %1202 = vmatpush1.msra.mxu0 0.0
        %1203 = vmatprep.subr.mxu0 0.0
        %1204 = vmatpush1.msra.mxu0 0.0
        %1205 = vmatprep.subr.mxu0 0.0
        %1206 = vmatpush1.msra.mxu0 0.0
        %1207 = vmatprep.subr.mxu0 0.0
        %1208 = vmatpush1.msra.mxu0 0.0
        %1209 = vmatprep.subr.mxu0 0.0
        %1210 = vmatpush1.msra.mxu0 0.0
        %1211 = vmatprep.mubr.f32.mxu0 0.0
        %1212 = vmatmul.mubr.f32.gmra.mrb[0].mxu0 %v1145
        %v1213 = vpop.f32.mrb[0].mxu0
        %v1214 = vadd.f32 0.0, %v1213
        %v1215 = vpop.f32.mrb[0].mxu0
        %1216 = vdwg.mxu0
        %1217 = vmatprep.subr.mxu0 0.0
        %1218 = vmatpush1.msra.mxu0 %v1131
        %1219 = vmatprep.subr.mxu0 0.0
        %1220 = vmatpush1.msra.mxu0 %v1132
        %1221 = vmatprep.subr.mxu0 0.0
        %1222 = vmatpush1.msra.mxu0 %v1133
        %1223 = vmatprep.subr.mxu0 0.0
        %1224 = vmatpush1.msra.mxu0 %v1134
        %1225 = vmatprep.subr.mxu0 0.0
        %1226 = vmatpush1.msra.mxu0 0.0
        %1227 = vmatprep.subr.mxu0 0.0
        %1228 = vmatpush1.msra.mxu0 0.0
        %1229 = vmatprep.subr.mxu0 0.0
        %1230 = vmatpush1.msra.mxu0 0.0
        %1231 = vmatprep.subr.mxu0 0.0
        %1232 = vmatpush1.msra.mxu0 0.0
        %1233 = vmatprep.subr.mxu0 0.0
        %1234 = vmatpush1.msra.mxu0 0.0
        %1235 = vmatprep.subr.mxu0 0.0
        %1236 = vmatpush1.msra.mxu0 0.0
        %1237 = vmatprep.subr.mxu0 0.0
        %1238 = vmatpush1.msra.mxu0 0.0
        %1239 = vmatprep.subr.mxu0 0.0
        %1240 = vmatpush1.msra.mxu0 0.0
        %1241 = vmatprep.subr.mxu0 0.0
        %1242 = vmatpush1.msra.mxu0 0.0
        %1243 = vmatprep.subr.mxu0 0.0
        %1244 = vmatpush1.msra.mxu0 0.0
        %1245 = vmatprep.subr.mxu0 0.0
        %1246 = vmatpush1.msra.mxu0 0.0
        %1247 = vmatprep.subr.mxu0 0.0
        %1248 = vmatpush1.msra.mxu0 0.0
        %1249 = vmatprep.subr.mxu0 0.0
        %1250 = vmatpush1.msra.mxu0 0.0
        %1251 = vmatprep.subr.mxu0 0.0
        %1252 = vmatpush1.msra.mxu0 0.0
        %1253 = vmatprep.subr.mxu0 0.0
        %1254 = vmatpush1.msra.mxu0 0.0
        %1255 = vmatprep.subr.mxu0 0.0
        %1256 = vmatpush1.msra.mxu0 0.0
        %1257 = vmatprep.subr.mxu0 0.0
        %1258 = vmatpush1.msra.mxu0 0.0
        %1259 = vmatprep.subr.mxu0 0.0
        %1260 = vmatpush1.msra.mxu0 0.0
        %1261 = vmatprep.subr.mxu0 0.0
        %1262 = vmatpush1.msra.mxu0 0.0
        %1263 = vmatprep.subr.mxu0 0.0
        %1264 = vmatpush1.msra.mxu0 0.0
        %1265 = vmatprep.subr.mxu0 0.0
        %1266 = vmatpush1.msra.mxu0 0.0
        %1267 = vmatprep.subr.mxu0 0.0
        %1268 = vmatpush1.msra.mxu0 0.0
        %1269 = vmatprep.subr.mxu0 0.0
        %1270 = vmatpush1.msra.mxu0 0.0
        %1271 = vmatprep.subr.mxu0 0.0
        %1272 = vmatpush1.msra.mxu0 0.0
        %1273 = vmatprep.subr.mxu0 0.0
        %1274 = vmatpush1.msra.mxu0 0.0
        %1275 = vmatprep.subr.mxu0 0.0
        %1276 = vmatpush1.msra.mxu0 0.0
        %1277 = vmatprep.subr.mxu0 0.0
        %1278 = vmatpush1.msra.mxu0 0.0
        %1279 = vmatprep.subr.mxu0 0.0
        %1280 = vmatpush1.msra.mxu0 0.0
        %1281 = vmatprep.mubr.f32.mxu0 0.0
        %1282 = vmatmul.mubr.f32.gmra.mrb[0].mxu0 %v1145
        %v1283 = vpop.f32.mrb[0].mxu0
        %v1284 = vadd.f32 0.0, %v1283
        %v1285 = vpop.f32.mrb[0].mxu0
        %1286 = vdwg.mxu0
        %1287 = vmatprep.subr.mxu0 0.0
        %1288 = vmatpush1.msra.mxu0 %v601
        %1289 = vmatprep.subr.mxu0 0.0
        %1290 = vmatpush1.msra.mxu0 %v602
        %1291 = vmatprep.subr.mxu0 0.0
        %1292 = vmatpush1.msra.mxu0 %v603
        %1293 = vmatprep.subr.mxu0 0.0
        %1294 = vmatpush1.msra.mxu0 %v604
        %1295 = vmatprep.subr.mxu0 0.0
        %1296 = vmatpush1.msra.mxu0 0.0
        %1297 = vmatprep.subr.mxu0 0.0
        %1298 = vmatpush1.msra.mxu0 0.0
        %1299 = vmatprep.subr.mxu0 0.0
        %1300 = vmatpush1.msra.mxu0 0.0
        %1301 = vmatprep.subr.mxu0 0.0
        %1302 = vmatpush1.msra.mxu0 0.0
        %1303 = vmatprep.subr.mxu0 0.0
        %1304 = vmatpush1.msra.mxu0 0.0
        %1305 = vmatprep.subr.mxu0 0.0
        %1306 = vmatpush1.msra.mxu0 0.0
        %1307 = vmatprep.subr.mxu0 0.0
        %1308 = vmatpush1.msra.mxu0 0.0
        %1309 = vmatprep.subr.mxu0 0.0
        %1310 = vmatpush1.msra.mxu0 0.0
        %1311 = vmatprep.subr.mxu0 0.0
        %1312 = vmatpush1.msra.mxu0 0.0
        %1313 = vmatprep.subr.mxu0 0.0
        %1314 = vmatpush1.msra.mxu0 0.0
        %1315 = vmatprep.subr.mxu0 0.0
        %1316 = vmatpush1.msra.mxu0 0.0
        %1317 = vmatprep.subr.mxu0 0.0
        %1318 = vmatpush1.msra.mxu0 0.0
        %1319 = vmatprep.subr.mxu0 0.0
        %1320 = vmatpush1.msra.mxu0 0.0
        %1321 = vmatprep.subr.mxu0 0.0
        %1322 = vmatpush1.msra.mxu0 0.0
        %1323 = vmatprep.subr.mxu0 0.0
        %1324 = vmatpush1.msra.mxu0 0.0
        %1325 = vmatprep.subr.mxu0 0.0
        %1326 = vmatpush1.msra.mxu0 0.0
        %1327 = vmatprep.subr.mxu0 0.0
        %1328 = vmatpush1.msra.mxu0 0.0
        %1329 = vmatprep.subr.mxu0 0.0
        %1330 = vmatpush1.msra.mxu0 0.0
        %1331 = vmatprep.subr.mxu0 0.0
        %1332 = vmatpush1.msra.mxu0 0.0
        %1333 = vmatprep.subr.mxu0 0.0
        %1334 = vmatpush1.msra.mxu0 0.0
        %1335 = vmatprep.subr.mxu0 0.0
        %1336 = vmatpush1.msra.mxu0 0.0
        %1337 = vmatprep.subr.mxu0 0.0
        %1338 = vmatpush1.msra.mxu0 0.0
        %1339 = vmatprep.subr.mxu0 0.0
        %1340 = vmatpush1.msra.mxu0 0.0
        %1341 = vmatprep.subr.mxu0 0.0
        %1342 = vmatpush1.msra.mxu0 0.0
        %1343 = vmatprep.subr.mxu0 0.0
        %1344 = vmatpush1.msra.mxu0 0.0
        %1345 = vmatprep.subr.mxu0 0.0
        %1346 = vmatpush1.msra.mxu0 0.0
        %1347 = vmatprep.subr.mxu0 0.0
        %1348 = vmatpush1.msra.mxu0 0.0
        %1349 = vmatprep.subr.mxu0 0.0
        %1350 = vmatpush1.msra.mxu0 0.0
        %1351 = vmatprep.mubr.f32.mxu0 0.0
        %1352 = vmatmul.mubr.f32.gmra.mrb[0].mxu0 %v1145
        %v1353 = vpop.f32.mrb[0].mxu0
        %v1354 = vadd.f32 0.0, %v1353
        %v1355 = vpop.f32.mrb[0].mxu0
        %1356 = vdwg.mxu0
        %vm1357 = vcmask 257024
        %v1358 = vsel %vm1357, %v1284, 0.0
        %v1359 = vrot.slane %v1358, 4
        %v1360 = vadd.f32 %v1358, %v1359
        %v1361 = vrot.slane %v1360, 2
        %v1362 = vadd.f32 %v1360, %v1361
        %v1363 = vrot.slane %v1362, 1
        %v1364 = vadd.f32 %v1362, %v1363
        %v1365 = vrcp.pop 4.0
        %v1366 = vmul.f32 %v1364, %v1365
        %v1367 = vld [vmem:[%s5] sm:$0xff]
        %v1368 = vld [vmem:[%s5 + $0x8] sm:$0xff]
        %v1369 = vld [vmem:[%s5 + $0x10] sm:$0xff]
        %v1370 = vld [vmem:[%s5 + $0x18] sm:$0xff]
        %v1371 = vld [vmem:[%s6] sm:$0x1]
        %v1373 = vsel %vm739, %v1366, 0
        %1375 = vmatprep.subr.mxu0 0.0
        %1376 = vmatpush1.msra.mxu0 %v1367
        %1377 = vmatprep.subr.mxu0 0.0
        %1378 = vmatpush1.msra.mxu0 %v1368
        %1379 = vmatprep.subr.mxu0 0.0
        %1380 = vmatpush1.msra.mxu0 %v1369
        %1381 = vmatprep.subr.mxu0 0.0
        %1382 = vmatpush1.msra.mxu0 %v1370
        %1383 = vmatprep.subr.mxu0 0.0
        %1384 = vmatpush1.msra.mxu0 0.0
        %1385 = vmatprep.subr.mxu0 0.0
        %1386 = vmatpush1.msra.mxu0 0.0
        %1387 = vmatprep.subr.mxu0 0.0
        %1388 = vmatpush1.msra.mxu0 0.0
        %1389 = vmatprep.subr.mxu0 0.0
        %1390 = vmatpush1.msra.mxu0 0.0
        %1391 = vmatprep.subr.mxu0 0.0
        %1392 = vmatpush1.msra.mxu0 0.0
        %1393 = vmatprep.subr.mxu0 0.0
        %1394 = vmatpush1.msra.mxu0 0.0
        %1395 = vmatprep.subr.mxu0 0.0
        %1396 = vmatpush1.msra.mxu0 0.0
        %1397 = vmatprep.subr.mxu0 0.0
        %1398 = vmatpush1.msra.mxu0 0.0
        %1399 = vmatprep.subr.mxu0 0.0
        %1400 = vmatpush1.msra.mxu0 0.0
        %1401 = vmatprep.subr.mxu0 0.0
        %1402 = vmatpush1.msra.mxu0 0.0
        %1403 = vmatprep.subr.mxu0 0.0
        %1404 = vmatpush1.msra.mxu0 0.0
        %1405 = vmatprep.subr.mxu0 0.0
        %1406 = vmatpush1.msra.mxu0 0.0
        %1407 = vmatprep.subr.mxu0 0.0
        %1408 = vmatpush1.msra.mxu0 0.0
        %1409 = vmatprep.subr.mxu0 0.0
        %1410 = vmatpush1.msra.mxu0 0.0
        %1411 = vmatprep.subr.mxu0 0.0
        %1412 = vmatpush1.msra.mxu0 0.0
        %1413 = vmatprep.subr.mxu0 0.0
        %1414 = vmatpush1.msra.mxu0 0.0
        %1415 = vmatprep.subr.mxu0 0.0
        %1416 = vmatpush1.msra.mxu0 0.0
        %1417 = vmatprep.subr.mxu0 0.0
        %1418 = vmatpush1.msra.mxu0 0.0
        %1419 = vmatprep.subr.mxu0 0.0
        %1420 = vmatpush1.msra.mxu0 0.0
        %1421 = vmatprep.subr.mxu0 0.0
        %1422 = vmatpush1.msra.mxu0 0.0
        %1423 = vmatprep.subr.mxu0 0.0
        %1424 = vmatpush1.msra.mxu0 0.0
        %1425 = vmatprep.subr.mxu0 0.0
        %1426 = vmatpush1.msra.mxu0 0.0
        %1427 = vmatprep.subr.mxu0 0.0
        %1428 = vmatpush1.msra.mxu0 0.0
        %1429 = vmatprep.subr.mxu0 0.0
        %1430 = vmatpush1.msra.mxu0 0.0
        %1431 = vmatprep.subr.mxu0 0.0
        %1432 = vmatpush1.msra.mxu0 0.0
        %1433 = vmatprep.subr.mxu0 0.0
        %1434 = vmatpush1.msra.mxu0 0.0
        %1435 = vmatprep.subr.mxu0 0.0
        %1436 = vmatpush1.msra.mxu0 0.0
        %1437 = vmatprep.subr.mxu0 0.0
        %1438 = vmatpush1.msra.mxu0 0.0
        %1439 = vmatprep.mubr.f32.mxu0 0.0
        %1440 = vmatmul.mubr.f32.gmra.mrb[0].mxu0 %v1373
        %v1441 = vpop.f32.mrb[0].mxu0
        %v1442 = vadd.f32 %v1371, %v1441
        %v1443 = vpop.f32.mrb[0].mxu0
        %1444 = vdwg.mxu0
        %v1445 = vmul.f32 %v1442, 0.5
        %v1446 = vmul.f32 %v1442, %v1442
        %v1447 = vmul.f32 %v1446, %v1442
        %v1448 = vmul.f32 %v1447, 0.044715
        %v1449 = vadd.f32 %v1442, %v1448
        %v1450 = vmul.f32 %v1449, 0.7978846
        %v1451 = vtanh.pop %v1450
        %v1452 = vadd.f32 %v1451, 1.0
        %v1453 = vmul.f32 %v1445, %v1452
        %v1454 = vld [vmem:[%s7] sm:$0xff]
        %v1455 = vld [vmem:[%s7 + $0x8] sm:$0xff]
        %v1456 = vld [vmem:[%s8] sm:$0x1]
        %vm1457 = vcmask 130048
        %v1459 = vsel %vm1457, %v1453, 0
        %1461 = vmatprep.subr.mxu0 0.0
        %1462 = vmatpush1.msra.mxu0 %v1454
        %1463 = vmatprep.subr.mxu0 0.0
        %1464 = vmatpush1.msra.mxu0 %v1455
        %1465 = vmatprep.subr.mxu0 0.0
        %1466 = vmatpush1.msra.mxu0 0.0
        %1467 = vmatprep.subr.mxu0 0.0
        %1468 = vmatpush1.msra.mxu0 0.0
        %1469 = vmatprep.subr.mxu0 0.0
        %1470 = vmatpush1.msra.mxu0 0.0
        %1471 = vmatprep.subr.mxu0 0.0
        %1472 = vmatpush1.msra.mxu0 0.0
        %1473 = vmatprep.subr.mxu0 0.0
        %1474 = vmatpush1.msra.mxu0 0.0
        %1475 = vmatprep.subr.mxu0 0.0
        %1476 = vmatpush1.msra.mxu0 0.0
        %1477 = vmatprep.subr.mxu0 0.0
        %1478 = vmatpush1.msra.mxu0 0.0
        %1479 = vmatprep.subr.mxu0 0.0
        %1480 = vmatpush1.msra.mxu0 0.0
        %1481 = vmatprep.subr.mxu0 0.0
        %1482 = vmatpush1.msra.mxu0 0.0
        %1483 = vmatprep.subr.mxu0 0.0
        %1484 = vmatpush1.msra.mxu0 0.0
        %1485 = vmatprep.subr.mxu0 0.0
        %1486 = vmatpush1.msra.mxu0 0.0
        %1487 = vmatprep.subr.mxu0 0.0
        %1488 = vmatpush1.msra.mxu0 0.0
        %1489 = vmatprep.subr.mxu0 0.0
        %1490 = vmatpush1.msra.mxu0 0.0
        %1491 = vmatprep.subr.mxu0 0.0
        %1492 = vmatpush1.msra.mxu0 0.0
        %1493 = vmatprep.subr.mxu0 0.0
        %1494 = vmatpush1.msra.mxu0 0.0
        %1495 = vmatprep.subr.mxu0 0.0
        %1496 = vmatpush1.msra.mxu0 0.0
        %1497 = vmatprep.subr.mxu0 0.0
        %1498 = vmatpush1.msra.mxu0 0.0
        %1499 = vmatprep.subr.mxu0 0.0
        %1500 = vmatpush1.msra.mxu0 0.0
        %1501 = vmatprep.subr.mxu0 0.0
        %1502 = vmatpush1.msra.mxu0 0.0
        %1503 = vmatprep.subr.mxu0 0.0
        %1504 = vmatpush1.msra.mxu0 0.0
        %1505 = vmatprep.subr.mxu0 0.0
        %1506 = vmatpush1.msra.mxu0 0.0
        %1507 = vmatprep.subr.mxu0 0.0
        %1508 = vmatpush1.msra.mxu0 0.0
        %1509 = vmatprep.subr.mxu0 0.0
        %1510 = vmatpush1.msra.mxu0 0.0
        %1511 = vmatprep.subr.mxu0 0.0
        %1512 = vmatpush1.msra.mxu0 0.0
        %1513 = vmatprep.subr.mxu0 0.0
        %1514 = vmatpush1.msra.mxu0 0.0
        %1515 = vmatprep.subr.mxu0 0.0
        %1516 = vmatpush1.msra.mxu0 0.0
        %1517 = vmatprep.subr.mxu0 0.0
        %1518 = vmatpush1.msra.mxu0 0.0
        %1519 = vmatprep.subr.mxu0 0.0
        %1520 = vmatpush1.msra.mxu0 0.0
        %1521 = vmatprep.subr.mxu0 0.0
        %1522 = vmatpush1.msra.mxu0 0.0
        %1523 = vmatprep.subr.mxu0 0.0
        %1524 = vmatpush1.msra.mxu0 0.0
        %1525 = vmatprep.mubr.f32.mxu0 0.0
        %1526 = vmatmul.mubr.f32.gmra.mrb[0].mxu0 %v1459
        %v1527 = vpop.f32.mrb[0].mxu0
        %v1528 = vadd.f32 %v1456, %v1527
        %v1529 = vpop.f32.mrb[0].mxu0
        %1530 = vdwg.mxu0
        %v1531 = vxor.u32 %v1528, 2147483648
        %v1532 = vmul.f32 %v1531, 1.442695
        %v1533 = vpow.pop %v1532
        %v1534 = vadd.f32 %v1533, 1.0
        %v1535 = vrcp.pop %v1534
        %v1536 = vmul.f32 1.0, %v1535
        %vm1537 = vcmp.eq.s32.totalorder %v606, %v1136
        %v1538 = vlaneseq
        %v1539 = vshrl.u32 %v1538, 7
        %v1540 = vsub.s32 0, %v1539
        %v1541 = vrot.slane %v1536, %v1540
        %v1542 = vsel %vm1537, %v1541, 0.0
        %vm1543 = vcmask 31744
        %v1545 = vsel %vm1543, %v1542, 0
        %vm1547 = vcmask 1043456
        %v1549 = vsel %vm1547, %v1284, 0
        %1551 = vmatprep.subr.mxu0 0.0
        %1552 = vmatpush1.msra.mxu0 %v1549
        %1553 = vmatprep.subr.mxu0 0.0
        %1554 = vmatpush1.msra.mxu0 0.0
        %1555 = vmatprep.subr.mxu0 0.0
        %1556 = vmatpush1.msra.mxu0 0.0
        %1557 = vmatprep.subr.mxu0 0.0
        %1558 = vmatpush1.msra.mxu0 0.0
        %1559 = vmatprep.subr.mxu0 0.0
        %1560 = vmatpush1.msra.mxu0 0.0
        %1561 = vmatprep.subr.mxu0 0.0
        %1562 = vmatpush1.msra.mxu0 0.0
        %1563 = vmatprep.subr.mxu0 0.0
        %1564 = vmatpush1.msra.mxu0 0.0
        %1565 = vmatprep.subr.mxu0 0.0
        %1566 = vmatpush1.msra.mxu0 0.0
        %1567 = vmatprep.subr.mxu0 0.0
        %1568 = vmatpush1.msra.mxu0 0.0
        %1569 = vmatprep.subr.mxu0 0.0
        %1570 = vmatpush1.msra.mxu0 0.0
        %1571 = vmatprep.subr.mxu0 0.0
        %1572 = vmatpush1.msra.mxu0 0.0
        %1573 = vmatprep.subr.mxu0 0.0
        %1574 = vmatpush1.msra.mxu0 0.0
        %1575 = vmatprep.subr.mxu0 0.0
        %1576 = vmatpush1.msra.mxu0 0.0
        %1577 = vmatprep.subr.mxu0 0.0
        %1578 = vmatpush1.msra.mxu0 0.0
        %1579 = vmatprep.subr.mxu0 0.0
        %1580 = vmatpush1.msra.mxu0 0.0
        %1581 = vmatprep.subr.mxu0 0.0
        %1582 = vmatpush1.msra.mxu0 0.0
        %1583 = vmatprep.subr.mxu0 0.0
        %1584 = vmatpush1.msra.mxu0 0.0
        %1585 = vmatprep.subr.mxu0 0.0
        %1586 = vmatpush1.msra.mxu0 0.0
        %1587 = vmatprep.subr.mxu0 0.0
        %1588 = vmatpush1.msra.mxu0 0.0
        %1589 = vmatprep.subr.mxu0 0.0
        %1590 = vmatpush1.msra.mxu0 0.0
        %1591 = vmatprep.subr.mxu0 0.0
        %1592 = vmatpush1.msra.mxu0 0.0
        %1593 = vmatprep.subr.mxu0 0.0
        %1594 = vmatpush1.msra.mxu0 0.0
        %1595 = vmatprep.subr.mxu0 0.0
        %1596 = vmatpush1.msra.mxu0 0.0
        %1597 = vmatprep.subr.mxu0 0.0
        %1598 = vmatpush1.msra.mxu0 0.0
        %1599 = vmatprep.subr.mxu0 0.0
        %1600 = vmatpush1.msra.mxu0 0.0
        %1601 = vmatprep.subr.mxu0 0.0
        %1602 = vmatpush1.msra.mxu0 0.0
        %1603 = vmatprep.subr.mxu0 0.0
        %1604 = vmatpush1.msra.mxu0 0.0
        %1605 = vmatprep.subr.mxu0 0.0
        %1606 = vmatpush1.msra.mxu0 0.0
        %1607 = vmatprep.subr.mxu0 0.0
        %1608 = vmatpush1.msra.mxu0 0.0
        %1609 = vmatprep.subr.mxu0 0.0
        %1610 = vmatpush1.msra.mxu0 0.0
        %1611 = vmatprep.subr.mxu0 0.0
        %1612 = vmatpush1.msra.mxu0 0.0
        %1613 = vmatprep.subr.mxu0 0.0
        %1614 = vmatpush1.msra.mxu0 0.0
        %1615 = vmatprep.mubr.f32.mxu0 0.0
        %1616 = vmatmul.mubr.f32.gmra.mrb[0].mxu0 %v1545
        %v1617 = vpop.f32.mrb[0].mxu0
        %v1618 = vadd.f32 0.0, %v1617
        %v1619 = vpop.f32.mrb[0].mxu0
        %1620 = vdwg.mxu0
        %v1621 = vld [vmem:[%s9] sm:$0xff]
        %v1622 = vld [vmem:[%s9 + $0x8] sm:$0xff]
        %v1623 = vld [vmem:[%s9 + $0x10] sm:$0xff]
        %v1624 = vld [vmem:[%s9 + $0x18] sm:$0xff]
        %s1625 = scalar_lea.vmem %s9, 32
        %v1626 = vld [vmem:[%s1625] sm:$0xff]
        %v1627 = vld [vmem:[%s1625 + $0x8] sm:$0xff]
        %v1628 = vld [vmem:[%s1625 + $0x10] sm:$0xff]
        %v1629 = vld [vmem:[%s1625 + $0x18] sm:$0xff]
        %v1630 = vsel %vm739, %v1284, 0
        %1632 = vmatprep.subr.mxu0 0.0
        %1633 = vmatpush1.msra.mxu0 %v1626
        %1634 = vmatprep.subr.mxu0 0.0
        %1635 = vmatpush1.msra.mxu0 %v1627
        %1636 = vmatprep.subr.mxu0 0.0
        %1637 = vmatpush1.msra.mxu0 %v1628
        %1638 = vmatprep.subr.mxu0 0.0
        %1639 = vmatpush1.msra.mxu0 %v1629
        %1640 = vmatprep.subr.mxu0 0.0
        %1641 = vmatpush1.msra.mxu0 0.0
        %1642 = vmatprep.subr.mxu0 0.0
        %1643 = vmatpush1.msra.mxu0 0.0
        %1644 = vmatprep.subr.mxu0 0.0
        %1645 = vmatpush1.msra.mxu0 0.0
        %1646 = vmatprep.subr.mxu0 0.0
        %1647 = vmatpush1.msra.mxu0 0.0
        %1648 = vmatprep.subr.mxu0 0.0
        %1649 = vmatpush1.msra.mxu0 0.0
        %1650 = vmatprep.subr.mxu0 0.0
        %1651 = vmatpush1.msra.mxu0 0.0
        %1652 = vmatprep.subr.mxu0 0.0
        %1653 = vmatpush1.msra.mxu0 0.0
        %1654 = vmatprep.subr.mxu0 0.0
        %1655 = vmatpush1.msra.mxu0 0.0
        %1656 = vmatprep.subr.mxu0 0.0
        %1657 = vmatpush1.msra.mxu0 0.0
        %1658 = vmatprep.subr.mxu0 0.0
        %1659 = vmatpush1.msra.mxu0 0.0
        %1660 = vmatprep.subr.mxu0 0.0
        %1661 = vmatpush1.msra.mxu0 0.0
        %1662 = vmatprep.subr.mxu0 0.0
        %1663 = vmatpush1.msra.mxu0 0.0
        %1664 = vmatprep.subr.mxu0 0.0
        %1665 = vmatpush1.msra.mxu0 0.0
        %1666 = vmatprep.subr.mxu0 0.0
        %1667 = vmatpush1.msra.mxu0 0.0
        %1668 = vmatprep.subr.mxu0 0.0
        %1669 = vmatpush1.msra.mxu0 0.0
        %1670 = vmatprep.subr.mxu0 0.0
        %1671 = vmatpush1.msra.mxu0 0.0
        %1672 = vmatprep.subr.mxu0 0.0
        %1673 = vmatpush1.msra.mxu0 0.0
        %1674 = vmatprep.subr.mxu0 0.0
        %1675 = vmatpush1.msra.mxu0 0.0
        %1676 = vmatprep.subr.mxu0 0.0
        %1677 = vmatpush1.msra.mxu0 0.0
        %1678 = vmatprep.subr.mxu0 0.0
        %1679 = vmatpush1.msra.mxu0 0.0
        %1680 = vmatprep.subr.mxu0 0.0
        %1681 = vmatpush1.msra.mxu0 0.0
        %1682 = vmatprep.subr.mxu0 0.0
        %1683 = vmatpush1.msra.mxu0 0.0
        %1684 = vmatprep.subr.mxu0 0.0
        %1685 = vmatpush1.msra.mxu0 0.0
        %1686 = vmatprep.subr.mxu0 0.0
        %1687 = vmatpush1.msra.mxu0 0.0
        %1688 = vmatprep.subr.mxu0 0.0
        %1689 = vmatpush1.msra.mxu0 0.0
        %1690 = vmatprep.subr.mxu0 0.0
        %1691 = vmatpush1.msra.mxu0 0.0
        %1692 = vmatprep.subr.mxu0 0.0
        %1693 = vmatpush1.msra.mxu0 0.0
        %1694 = vmatprep.subr.mxu0 0.0
        %1695 = vmatpush1.msra.mxu0 0.0
        %1696 = vmatprep.mubr.f32.mxu0 0.0
        %1697 = vmatmul.mubr.f32.gmra.mrb[0].mxu0 %v1630
        %v1698 = vpop.f32.mrb[0].mxu0
        %v1699 = vadd.f32 0.0, %v1698
        %v1700 = vpop.f32.mrb[0].mxu0
        %1701 = vdwg.mxu0
        %v1703 = vsel %vm739, %v1214, 0
        %1705 = vmatprep.subr.mxu0 0.0
        %1706 = vmatpush1.msra.mxu0 %v1621
        %1707 = vmatprep.subr.mxu0 0.0
        %1708 = vmatpush1.msra.mxu0 %v1622
        %1709 = vmatprep.subr.mxu0 0.0
        %1710 = vmatpush1.msra.mxu0 %v1623
        %1711 = vmatprep.subr.mxu0 0.0
        %1712 = vmatpush1.msra.mxu0 %v1624
        %1713 = vmatprep.subr.mxu0 0.0
        %1714 = vmatpush1.msra.mxu0 0.0
        %1715 = vmatprep.subr.mxu0 0.0
        %1716 = vmatpush1.msra.mxu0 0.0
        %1717 = vmatprep.subr.mxu0 0.0
        %1718 = vmatpush1.msra.mxu0 0.0
        %1719 = vmatprep.subr.mxu0 0.0
        %1720 = vmatpush1.msra.mxu0 0.0
        %1721 = vmatprep.subr.mxu0 0.0
        %1722 = vmatpush1.msra.mxu0 0.0
        %1723 = vmatprep.subr.mxu0 0.0
        %1724 = vmatpush1.msra.mxu0 0.0
        %1725 = vmatprep.subr.mxu0 0.0
        %1726 = vmatpush1.msra.mxu0 0.0
        %1727 = vmatprep.subr.mxu0 0.0
        %1728 = vmatpush1.msra.mxu0 0.0
        %1729 = vmatprep.subr.mxu0 0.0
        %1730 = vmatpush1.msra.mxu0 0.0
        %1731 = vmatprep.subr.mxu0 0.0
        %1732 = vmatpush1.msra.mxu0 0.0
        %1733 = vmatprep.subr.mxu0 0.0
        %1734 = vmatpush1.msra.mxu0 0.0
        %1735 = vmatprep.subr.mxu0 0.0
        %1736 = vmatpush1.msra.mxu0 0.0
        %1737 = vmatprep.subr.mxu0 0.0
        %1738 = vmatpush1.msra.mxu0 0.0
        %1739 = vmatprep.subr.mxu0 0.0
        %1740 = vmatpush1.msra.mxu0 0.0
        %1741 = vmatprep.subr.mxu0 0.0
        %1742 = vmatpush1.msra.mxu0 0.0
        %1743 = vmatprep.subr.mxu0 0.0
        %1744 = vmatpush1.msra.mxu0 0.0
        %1745 = vmatprep.subr.mxu0 0.0
        %1746 = vmatpush1.msra.mxu0 0.0
        %1747 = vmatprep.subr.mxu0 0.0
        %1748 = vmatpush1.msra.mxu0 0.0
        %1749 = vmatprep.subr.mxu0 0.0
        %1750 = vmatpush1.msra.mxu0 0.0
        %1751 = vmatprep.subr.mxu0 0.0
        %1752 = vmatpush1.msra.mxu0 0.0
        %1753 = vmatprep.subr.mxu0 0.0
        %1754 = vmatpush1.msra.mxu0 0.0
        %1755 = vmatprep.subr.mxu0 0.0
        %1756 = vmatpush1.msra.mxu0 0.0
        %1757 = vmatprep.subr.mxu0 0.0
        %1758 = vmatpush1.msra.mxu0 0.0
        %1759 = vmatprep.subr.mxu0 0.0
        %1760 = vmatpush1.msra.mxu0 0.0
        %1761 = vmatprep.subr.mxu0 0.0
        %1762 = vmatpush1.msra.mxu0 0.0
        %1763 = vmatprep.subr.mxu0 0.0
        %1764 = vmatpush1.msra.mxu0 0.0
        %1765 = vmatprep.subr.mxu0 0.0
        %1766 = vmatpush1.msra.mxu0 0.0
        %1767 = vmatprep.subr.mxu0 0.0
        %1768 = vmatpush1.msra.mxu0 0.0
        %1769 = vmatprep.mubr.f32.mxu0 0.0
        %1770 = vmatmul.mubr.f32.gmra.mrb[0].mxu0 %v1703
        %v1771 = vpop.f32.mrb[0].mxu0
        %v1772 = vadd.f32 %v1699, %v1771
        %v1773 = vpop.f32.mrb[0].mxu0
        %1774 = vdwg.mxu0
        %s1775 = scalar_lea.vmem %s9, 64
        %v1776 = vld [vmem:[%s1775] sm:$0xff]
        %v1777 = vld [vmem:[%s1775 + $0x8] sm:$0xff]
        %v1778 = vld [vmem:[%s1775 + $0x10] sm:$0xff]
        %v1779 = vld [vmem:[%s1775 + $0x18] sm:$0xff]
        %v1781 = vsel %vm739, %v1618, 0
        %1783 = vmatprep.subr.mxu0 0.0
        %1784 = vmatpush1.msra.mxu0 %v1776
        %1785 = vmatprep.subr.mxu0 0.0
        %1786 = vmatpush1.msra.mxu0 %v1777
        %1787 = vmatprep.subr.mxu0 0.0
        %1788 = vmatpush1.msra.mxu0 %v1778
        %1789 = vmatprep.subr.mxu0 0.0
        %1790 = vmatpush1.msra.mxu0 %v1779
        %1791 = vmatprep.subr.mxu0 0.0
        %1792 = vmatpush1.msra.mxu0 0.0
        %1793 = vmatprep.subr.mxu0 0.0
        %1794 = vmatpush1.msra.mxu0 0.0
        %1795 = vmatprep.subr.mxu0 0.0
        %1796 = vmatpush1.msra.mxu0 0.0
        %1797 = vmatprep.subr.mxu0 0.0
        %1798 = vmatpush1.msra.mxu0 0.0
        %1799 = vmatprep.subr.mxu0 0.0
        %1800 = vmatpush1.msra.mxu0 0.0
        %1801 = vmatprep.subr.mxu0 0.0
        %1802 = vmatpush1.msra.mxu0 0.0
        %1803 = vmatprep.subr.mxu0 0.0
        %1804 = vmatpush1.msra.mxu0 0.0
        %1805 = vmatprep.subr.mxu0 0.0
        %1806 = vmatpush1.msra.mxu0 0.0
        %1807 = vmatprep.subr.mxu0 0.0
        %1808 = vmatpush1.msra.mxu0 0.0
        %1809 = vmatprep.subr.mxu0 0.0
        %1810 = vmatpush1.msra.mxu0 0.0
        %1811 = vmatprep.subr.mxu0 0.0
        %1812 = vmatpush1.msra.mxu0 0.0
        %1813 = vmatprep.subr.mxu0 0.0
        %1814 = vmatpush1.msra.mxu0 0.0
        %1815 = vmatprep.subr.mxu0 0.0
        %1816 = vmatpush1.msra.mxu0 0.0
        %1817 = vmatprep.subr.mxu0 0.0
        %1818 = vmatpush1.msra.mxu0 0.0
        %1819 = vmatprep.subr.mxu0 0.0
        %1820 = vmatpush1.msra.mxu0 0.0
        %1821 = vmatprep.subr.mxu0 0.0
        %1822 = vmatpush1.msra.mxu0 0.0
        %1823 = vmatprep.subr.mxu0 0.0
        %1824 = vmatpush1.msra.mxu0 0.0
        %1825 = vmatprep.subr.mxu0 0.0
        %1826 = vmatpush1.msra.mxu0 0.0
        %1827 = vmatprep.subr.mxu0 0.0
        %1828 = vmatpush1.msra.mxu0 0.0
        %1829 = vmatprep.subr.mxu0 0.0
        %1830 = vmatpush1.msra.mxu0 0.0
        %1831 = vmatprep.subr.mxu0 0.0
        %1832 = vmatpush1.msra.mxu0 0.0
        %1833 = vmatprep.subr.mxu0 0.0
        %1834 = vmatpush1.msra.mxu0 0.0
        %1835 = vmatprep.subr.mxu0 0.0
        %1836 = vmatpush1.msra.mxu0 0.0
        %1837 = vmatprep.subr.mxu0 0.0
        %1838 = vmatpush1.msra.mxu0 0.0
        %1839 = vmatprep.subr.mxu0 0.0
        %1840 = vmatpush1.msra.mxu0 0.0
        %1841 = vmatprep.subr.mxu0 0.0
        %1842 = vmatpush1.msra.mxu0 0.0
        %1843 = vmatprep.subr.mxu0 0.0
        %1844 = vmatpush1.msra.mxu0 0.0
        %1845 = vmatprep.subr.mxu0 0.0
        %1846 = vmatpush1.msra.mxu0 0.0
        %1847 = vmatprep.mubr.f32.mxu0 0.0
        %1848 = vmatmul.mubr.f32.gmra.mrb[0].mxu0 %v1781
        %v1849 = vpop.f32.mrb[0].mxu0
        %v1850 = vadd.f32 0.0, %v1849
        %v1851 = vpop.f32.mrb[0].mxu0
        %1852 = vdwg.mxu0
        %v1853 = vadd.f32 %v1772, %v1850
        %v1854 = vld [vmem:[%s10] sm:$0x1]
        %v1856 = vlaneseq
        %v1857 = vshrl.u32 %v1856, 7
        %v1858 = vsub.s32 0, %v1857
        %v1859 = vrot.slane %v1854, %v1858
        %v1861 = vadd.f32 %v1853, %v1859
        %v1862 = vmul.f32 %v1861, 0.5
        %v1863 = vmul.f32 %v1861, %v1861
        %v1864 = vmul.f32 %v1863, %v1861
        %v1865 = vmul.f32 %v1864, 0.044715
        %v1866 = vadd.f32 %v1861, %v1865
        %v1867 = vmul.f32 %v1866, 0.7978846
        %v1868 = vtanh.pop %v1867
        %v1869 = vadd.f32 %v1868, 1.0
        %v1870 = vmul.f32 %v1862, %v1869
        %v1871 = vld [vmem:[%s11] sm:$0xff]
        %v1872 = vld [vmem:[%s11 + $0x8] sm:$0xff]
        %v1873 = vld [vmem:[%s11 + $0x10] sm:$0xff]
        %v1874 = vld [vmem:[%s11 + $0x18] sm:$0xff]
        %v1875 = vld [vmem:[%s12] sm:$0x1]
        %v1877 = vlaneseq
        %v1878 = vshrl.u32 %v1877, 7
        %v1879 = vsub.s32 0, %v1878
        %v1880 = vrot.slane %v1875, %v1879
        %v1883 = vsel %vm739, %v1870, 0
        %1885 = vmatprep.subr.mxu0 0.0
        %1886 = vmatpush1.msra.mxu0 %v1871
        %1887 = vmatprep.subr.mxu0 0.0
        %1888 = vmatpush1.msra.mxu0 %v1872
        %1889 = vmatprep.subr.mxu0 0.0
        %1890 = vmatpush1.msra.mxu0 %v1873
        %1891 = vmatprep.subr.mxu0 0.0
        %1892 = vmatpush1.msra.mxu0 %v1874
        %1893 = vmatprep.subr.mxu0 0.0
        %1894 = vmatpush1.msra.mxu0 0.0
        %1895 = vmatprep.subr.mxu0 0.0
        %1896 = vmatpush1.msra.mxu0 0.0
        %1897 = vmatprep.subr.mxu0 0.0
        %1898 = vmatpush1.msra.mxu0 0.0
        %1899 = vmatprep.subr.mxu0 0.0
        %1900 = vmatpush1.msra.mxu0 0.0
        %1901 = vmatprep.subr.mxu0 0.0
        %1902 = vmatpush1.msra.mxu0 0.0
        %1903 = vmatprep.subr.mxu0 0.0
        %1904 = vmatpush1.msra.mxu0 0.0
        %1905 = vmatprep.subr.mxu0 0.0
        %1906 = vmatpush1.msra.mxu0 0.0
        %1907 = vmatprep.subr.mxu0 0.0
        %1908 = vmatpush1.msra.mxu0 0.0
        %1909 = vmatprep.subr.mxu0 0.0
        %1910 = vmatpush1.msra.mxu0 0.0
        %1911 = vmatprep.subr.mxu0 0.0
        %1912 = vmatpush1.msra.mxu0 0.0
        %1913 = vmatprep.subr.mxu0 0.0
        %1914 = vmatpush1.msra.mxu0 0.0
        %1915 = vmatprep.subr.mxu0 0.0
        %1916 = vmatpush1.msra.mxu0 0.0
        %1917 = vmatprep.subr.mxu0 0.0
        %1918 = vmatpush1.msra.mxu0 0.0
        %1919 = vmatprep.subr.mxu0 0.0
        %1920 = vmatpush1.msra.mxu0 0.0
        %1921 = vmatprep.subr.mxu0 0.0
        %1922 = vmatpush1.msra.mxu0 0.0
        %1923 = vmatprep.subr.mxu0 0.0
        %1924 = vmatpush1.msra.mxu0 0.0
        %1925 = vmatprep.subr.mxu0 0.0
        %1926 = vmatpush1.msra.mxu0 0.0
        %1927 = vmatprep.subr.mxu0 0.0
        %1928 = vmatpush1.msra.mxu0 0.0
        %1929 = vmatprep.subr.mxu0 0.0
        %1930 = vmatpush1.msra.mxu0 0.0
        %1931 = vmatprep.subr.mxu0 0.0
        %1932 = vmatpush1.msra.mxu0 0.0
        %1933 = vmatprep.subr.mxu0 0.0
        %1934 = vmatpush1.msra.mxu0 0.0
        %1935 = vmatprep.subr.mxu0 0.0
        %1936 = vmatpush1.msra.mxu0 0.0
        %1937 = vmatprep.subr.mxu0 0.0
        %1938 = vmatpush1.msra.mxu0 0.0
        %1939 = vmatprep.subr.mxu0 0.0
        %1940 = vmatpush1.msra.mxu0 0.0
        %1941 = vmatprep.subr.mxu0 0.0
        %1942 = vmatpush1.msra.mxu0 0.0
        %1943 = vmatprep.subr.mxu0 0.0
        %1944 = vmatpush1.msra.mxu0 0.0
        %1945 = vmatprep.subr.mxu0 0.0
        %1946 = vmatpush1.msra.mxu0 0.0
        %1947 = vmatprep.subr.mxu0 0.0
        %1948 = vmatpush1.msra.mxu0 0.0
        %1949 = vmatprep.mubr.f32.mxu0 0.0
        %1950 = vmatmul.mubr.f32.gmra.mrb[0].mxu0 %v1883
        %v1951 = vpop.f32.mrb[0].mxu0
        %v1952 = vadd.f32 %v1880, %v1951
        %v1953 = vpop.f32.mrb[0].mxu0
        %1954 = vdwg.mxu0
        %vm1955 = vcmask 19456
        %v1956 = vsel %vm1955, %v1952, -inf
        %1957 = vmax.xlane.f32.xlu0 %v1956
        %v1958 = vpop.xlane.xlu0 %1957
        %v1959 = vsub.f32 %v1952, %v1958
        %v1960 = vmul.f32 %v1959, 1.442695
        %v1961 = vpow.pop %v1960
        %v1962 = vsel %vm1955, %v1961, 0.0
        %1963 = vadd.xlane.f32.xlu0 %v1962
        %v1964 = vpop.xlane.xlu0 %1963
        %v1965 = vrcp.pop %v1964
        %v1966 = vmul.f32 %v1961, %v1965
        %1968 = vset.pattern.permute.xlu0 0
        %1969 = vperm.xlu0 %1968, %v1966
        %v1970 = vpop.permute.xlu0 %1969
        %v1972 = vmul.f32 %v1970, %v1214
        %1973 = vset.pattern.permute.xlu0 1
        %1974 = vperm.xlu0 %1973, %v1966
        %v1975 = vpop.permute.xlu0 %1974
        %v1977 = vmul.f32 %v1975, %v1284
        %v1978 = vadd.f32 %v1972, %v1977
        %1979 = vset.pattern.permute.xlu0 2
        %1980 = vperm.xlu0 %1979, %v1966
        %v1981 = vpop.permute.xlu0 %1980
        %v1983 = vmul.f32 %v1981, %v1618
        %v1984 = vadd.f32 %v1978, %v1983
        %v1985 = vld [vmem:[%s13] sm:$0xff]
        %v1986 = vld [vmem:[%s13 + $0x8] sm:$0xff]
        %v1987 = vld [vmem:[%s13 + $0x10] sm:$0xff]
        %v1988 = vld [vmem:[%s13 + $0x18] sm:$0xff]
        %v1989 = vld [vmem:[%s14] sm:$0x1]
        %v1991 = vlaneseq
        %v1992 = vshrl.u32 %v1991, 7
        %v1993 = vsub.s32 0, %v1992
        %v1994 = vrot.slane %v1989, %v1993
        %v1997 = vsel %vm739, %v1354, 0
        %1999 = vmatprep.subr.mxu0 0.0
        %2000 = vmatpush1.msra.mxu0 %v1985
        %2001 = vmatprep.subr.mxu0 0.0
        %2002 = vmatpush1.msra.mxu0 %v1986
        %2003 = vmatprep.subr.mxu0 0.0
        %2004 = vmatpush1.msra.mxu0 %v1987
        %2005 = vmatprep.subr.mxu0 0.0
        %2006 = vmatpush1.msra.mxu0 %v1988
        %2007 = vmatprep.subr.mxu0 0.0
        %2008 = vmatpush1.msra.mxu0 0.0
        %2009 = vmatprep.subr.mxu0 0.0
        %2010 = vmatpush1.msra.mxu0 0.0
        %2011 = vmatprep.subr.mxu0 0.0
        %2012 = vmatpush1.msra.mxu0 0.0
        %2013 = vmatprep.subr.mxu0 0.0
        %2014 = vmatpush1.msra.mxu0 0.0
        %2015 = vmatprep.subr.mxu0 0.0
        %2016 = vmatpush1.msra.mxu0 0.0
        %2017 = vmatprep.subr.mxu0 0.0
        %2018 = vmatpush1.msra.mxu0 0.0
        %2019 = vmatprep.subr.mxu0 0.0
        %2020 = vmatpush1.msra.mxu0 0.0
        %2021 = vmatprep.subr.mxu0 0.0
        %2022 = vmatpush1.msra.mxu0 0.0
        %2023 = vmatprep.subr.mxu0 0.0
        %2024 = vmatpush1.msra.mxu0 0.0
        %2025 = vmatprep.subr.mxu0 0.0
        %2026 = vmatpush1.msra.mxu0 0.0
        %2027 = vmatprep.subr.mxu0 0.0
        %2028 = vmatpush1.msra.mxu0 0.0
        %2029 = vmatprep.subr.mxu0 0.0
        %2030 = vmatpush1.msra.mxu0 0.0
        %2031 = vmatprep.subr.mxu0 0.0
        %2032 = vmatpush1.msra.mxu0 0.0
        %2033 = vmatprep.subr.mxu0 0.0
        %2034 = vmatpush1.msra.mxu0 0.0
        %2035 = vmatprep.subr.mxu0 0.0
        %2036 = vmatpush1.msra.mxu0 0.0
        %2037 = vmatprep.subr.mxu0 0.0
        %2038 = vmatpush1.msra.mxu0 0.0
        %2039 = vmatprep.subr.mxu0 0.0
        %2040 = vmatpush1.msra.mxu0 0.0
        %2041 = vmatprep.subr.mxu0 0.0
        %2042 = vmatpush1.msra.mxu0 0.0
        %2043 = vmatprep.subr.mxu0 0.0
        %2044 = vmatpush1.msra.mxu0 0.0
        %2045 = vmatprep.subr.mxu0 0.0
        %2046 = vmatpush1.msra.mxu0 0.0
        %2047 = vmatprep.subr.mxu0 0.0
        %2048 = vmatpush1.msra.mxu0 0.0
        %2049 = vmatprep.subr.mxu0 0.0
        %2050 = vmatpush1.msra.mxu0 0.0
        %2051 = vmatprep.subr.mxu0 0.0
        %2052 = vmatpush1.msra.mxu0 0.0
        %2053 = vmatprep.subr.mxu0 0.0
        %2054 = vmatpush1.msra.mxu0 0.0
        %2055 = vmatprep.subr.mxu0 0.0
        %2056 = vmatpush1.msra.mxu0 0.0
        %2057 = vmatprep.subr.mxu0 0.0
        %2058 = vmatpush1.msra.mxu0 0.0
        %2059 = vmatprep.subr.mxu0 0.0
        %2060 = vmatpush1.msra.mxu0 0.0
        %2061 = vmatprep.subr.mxu0 0.0
        %2062 = vmatpush1.msra.mxu0 0.0
        %2063 = vmatprep.mubr.f32.mxu0 0.0
        %2064 = vmatmul.mubr.f32.gmra.mrb[0].mxu0 %v1997
        %v2065 = vpop.f32.mrb[0].mxu0
        %v2066 = vadd.f32 %v1994, %v2065
        %v2067 = vpop.f32.mrb[0].mxu0
        %2068 = vdwg.mxu0
        %v2069 = vld [vmem:[%s15] sm:$0x1]
        %v2070 = vld [vmem:[%s16] sm:$0x1]
        %v2071 = vsel %vm1357, %v2066, 0.0
        %2072 = vadd.xlane.f32.xlu0 %v2071
        %v2073 = vpop.xlane.xlu0 %2072
        %v2074 = vrcp.pop 32.0
        %v2075 = vmul.f32 %v2073, %v2074
        %v2076 = vsub.f32 %v2066, %v2075
        %v2077 = vmul.f32 %v2076, %v2076
        %v2078 = vsel %vm1357, %v2077, 0.0
        %2079 = vadd.xlane.f32.xlu0 %v2078
        %v2080 = vpop.xlane.xlu0 %2079
        %v2081 = vmul.f32 %v2080, %v2074
        %v2082 = vadd.f32 %v2081, 1e-05
        %v2083 = vrsqrt.pop %v2082
        %v2084 = vmul.f32 %v2076, %v2083
        %v2086 = vlaneseq
        %v2087 = vshrl.u32 %v2086, 7
        %v2088 = vsub.s32 0, %v2087
        %v2089 = vrot.slane %v2069, %v2088
        %v2091 = vmul.f32 %v2084, %v2089
        %v2093 = vlaneseq
        %v2094 = vshrl.u32 %v2093, 7
        %v2095 = vsub.s32 0, %v2094
        %v2096 = vrot.slane %v2070, %v2095
        %v2098 = vadd.f32 %v2091, %v2096
        %v2099 = vadd.f32 %v1984, %v2098
        %v2100 = vld [vmem:[%s17] sm:$0x1]
        %v2101 = vld [vmem:[%s18] sm:$0x1]
        %v2102 = vsel %vm1357, %v2099, 0.0
        %2103 = vadd.xlane.f32.xlu0 %v2102
        %v2104 = vpop.xlane.xlu0 %2103
        %v2105 = vmul.f32 %v2104, %v2074
        %v2106 = vsub.f32 %v2099, %v2105
        %v2107 = vmul.f32 %v2106, %v2106
        %v2108 = vsel %vm1357, %v2107, 0.0
        %2109 = vadd.xlane.f32.xlu0 %v2108
        %v2110 = vpop.xlane.xlu0 %2109
        %v2111 = vmul.f32 %v2110, %v2074
        %v2112 = vadd.f32 %v2111, 1e-05
        %v2113 = vrsqrt.pop %v2112
        %v2114 = vmul.f32 %v2106, %v2113
        %v2116 = vlaneseq
        %v2117 = vshrl.u32 %v2116, 7
        %v2118 = vsub.s32 0, %v2117
        %v2119 = vrot.slane %v2100, %v2118
        %v2121 = vmul.f32 %v2114, %v2119
        %v2123 = vlaneseq
        %v2124 = vshrl.u32 %v2123, 7
        %v2125 = vsub.s32 0, %v2124
        %v2126 = vrot.slane %v2101, %v2125
        %v2128 = vadd.f32 %v2121, %v2126
        %2129 = vst.msk [vmem:[%s595] sm:$0xf] %vm1357, %v2128
        %s2130 = sand.u32 %s445, 1
        %s2131 = scalar_lea.sflag [#allocation3], %s2130
        %s2132 = sand.u32 %s445, 1
        %s2133 = smul.addr %s2132, 4
        %s2134 = scalar_lea.vmem [#allocation2], %s2133
        // Predicated region
        $region97: #{triad_forward.1} parent=95 // pred_check
          %p2135 = pneg %p455
        $region98: #{triad_forward.1} parent=95 // pred_check_branch
          %2137 = sbr.rel (%p2135) target = $region100
        $region99: #{triad_forward.1} parent=95 // pred_region
          %s2139 = ssub.s32 64, 64
          %2140 = vsyncadd %s2131, %s2139
          %s2141 = smul.addr %s33, 64
          %s2142 = scalar_lea.hbm %s19, %s2141
          %s2144 = sshll.u32 %s2134, 4
          %s2145 = int_to_ptr.vmem [resolvable:$true] %s2144
          %2147 = dma.vmem_to_hbm [thread:$0]  %s2145, 64, %s2142, %s2131
        $region100: #{triad_forward.1} parent=95 // pred_fallthru
          _
      $region96: #{triad_forward.1} parent=5 // pred_fallthru
        _
      %p2148 = scmp.le.s32.totalorder 2, %s28
      // Predicated region
      $region101: #{triad_forward.1} parent=5 // pred_check
        %p2149 = pneg %p2148
      $region102: #{triad_forward.1} parent=5 // pred_check_branch
        %2151 = sbr.rel (%p2149) target = $region104
      $region103: #{triad_forward.1} parent=5 // pred_region
        %s2152 = ssub.s32 %s28, 2
        // Predicated region
        $region105: #{triad_forward.1} parent=103 // pred_check
          %p2153 = pneg %p461
        $region106: #{triad_forward.1} parent=103 // pred_check_branch
          %2155 = sbr.rel (%p2153) target = $region108
        $region107: #{triad_forward.1} parent=103 // pred_region
          %s2156 = sand.u32 %s446, 1
          %s2157 = scalar_lea.sflag [#allocation3], %s2156
          %s2158 = sand.u32 %s446, 1
          %s2159 = smul.addr %s2158, 4
          %s2160 = scalar_lea.vmem [#allocation2], %s2159
          %2161 = dma.done %s2157, 64
        $region108: #{triad_forward.1} parent=103 // pred_fallthru
          _
      $region104: #{triad_forward.1} parent=5 // pred_fallthru
        _
    $region6: #{triad_forward.1} parent=1 // loop_footer
      %s32 = sadd.s32 1, %s28
    $region7: #{triad_forward.1} parent=1 // loop_footer_branch
      %27 = sbr.rel target = $region3
    $region8: #{triad_forward.1} parent=1 // loop_exit
      _
    %2162 = vsyncpa [#allocation3], 1
    %s2163 = scalar_lea.sflag [#allocation3], 1
    %2164 = vsyncpa %s2163, 1

</llo_original>
